<compile_context>
chip_gen: v7x
topology: tpu7x:2x2x1
jax: 0.10.0
libtpu: 0.0.40
codegen_flags: <defaults>
</compile_context>

<pallas_src>
import functools

import numpy as np

import jax
import jax.numpy as jnp
from jax import lax
from jax.experimental import pallas as pl
from jax.experimental.pallas import tpu as pltpu

LN_EPS = 1e-5  # nn.LayerNorm default eps


def _deep_gcn_kernel(x_ref, p_ref, proj_w_ref, proj_b_ref,
                     ln_g_ref, ln_b_ref, conv_w_ref, conv_b_ref,
                     pred_w_ref, pred_b_ref, out_ref, *, num_layers):
    bt, n, _ = p_ref.shape            # batch-tile, nodes (static)
    hid = proj_w_ref.shape[-1]
    rows = bt * n
    mm_dt = proj_w_ref.dtype          # matmul input dtype (bf16)
    inv_h = 1.0 / hid

    # ---- input projection on the flattened [bt*n, F] tile (bf16 -> f32) ----
    h = jnp.dot(x_ref[...], proj_w_ref[...],
                preferred_element_type=jnp.float32)
    h = h + proj_b_ref[...]           # [rows, H] f32

    p = p_ref[...]                    # [bt, n, n] normalized adjacency

    # ---- DeepGCN 'res+' layer: h = h + GCNConv(ReLU(LayerNorm(h))) ----
    def layer(l, h):
        # Single-pass LayerNorm statistics: var = E[x^2] - mean^2.
        s1 = jnp.sum(h, axis=-1, keepdims=True)
        s2 = jnp.sum(h * h, axis=-1, keepdims=True)
        mean = s1 * inv_h
        var = jnp.maximum(s2 * inv_h - mean * mean, 0.0)
        z = (h - mean) * lax.rsqrt(var + LN_EPS)
        z = z * ln_g_ref[l] + ln_b_ref[l]            # affine LayerNorm (f32)
        z = jnp.maximum(z, 0.0)                      # ReLU (dropout=0 -> no-op)
        z = jnp.dot(z.astype(mm_dt), conv_w_ref[l],  # [rows, H] @ [H, H]
                    preferred_element_type=jnp.float32)
        agg = jnp.einsum("bij,bjh->bih", p,          # per-sample P @ (zW)
                         z.reshape(bt, n, hid).astype(p.dtype),
                         preferred_element_type=jnp.float32)
        return h + agg.reshape(rows, hid) + conv_b_ref[l]   # residual + bias

    if num_layers <= 4:               # short stack: static unroll
        for l in range(num_layers):
            h = layer(l, h)
    else:                             # deep stack: bound live ranges per layer
        h = lax.fori_loop(0, num_layers, layer, h)

    # ---- fused 1-wide prediction head; emit [bt, n] with nodes on lanes ----
    pred = jnp.sum(h.reshape(bt, n, hid) * pred_w_ref[...], axis=-1)
    out_ref[...] = (pred + pred_b_ref[0, 0]).astype(out_ref.dtype)


def _normalized_adjacency(adj):
    """P = D^{-1/2} (A^T + I) D^{-1/2}; matches PyG gcn_norm with
    add_remaining_self_loops and unit edge weights (adj[b, src, dst])."""
    n = adj.shape[-1]
    a_t = jnp.swapaxes((adj != 0).astype(jnp.float32), -1, -2)
    b_hat = jnp.maximum(a_t, jnp.eye(n, dtype=jnp.float32))   # self-loops
    deg = jnp.sum(b_hat, axis=-1, keepdims=True)              # >= 1
    d = lax.rsqrt(deg)
    return d * b_hat * jnp.swapaxes(d, -1, -2)


def _vmem_capacity_bytes():
    try:
        return int(pltpu.get_tpu_info().vmem_capacity_bytes)
    except Exception:
        return 64 << 20    # conservative fallback (v7x per-TC VMEM)


def _num_tensorcores():
    try:
        info = pltpu.get_tpu_info()
        for attr in ("num_cores", "core_count", "num_tensorcores"):
            v = getattr(info, attr, None)
            if v:
                return int(v)
    except Exception:
        pass
    return 1


def _pick_batch_tile(bs, n, fits, min_grid=1):
    """Largest divisor bt of bs that (a) keeps BlockSpec sublane rules legal
    (bt == bs or bt % 8 == 0, so both bt and bt*n are 8-divisible), (b) passes
    the `fits` predicate (target rows / VMEM budget) and (c) keeps >= min_grid
    grid steps when possible, so v7x's two TensorCores both get work."""
    legal = [bt for bt in range(1, bs + 1)
             if bs % bt == 0 and (bt == bs or bt % 8 == 0)]
    for want_grid in sorted({min_grid, 1}, reverse=True):
        ok = [bt for bt in legal if fits(bt) and bs // bt >= want_grid]
        if ok:
            return max(ok)
    return min(legal)


def deep_gcn_forward(x, adj, params, num_layers, *,
                     matmul_dtype=jnp.bfloat16, prop_dtype=jnp.bfloat16,
                     target_rows=1024):
    # prop_dtype: dtype of the dense normalized adjacency P.  bf16 halves its
    # HBM/VMEM footprint; pass jnp.float32 for tighter parity with the f32
    # PyTorch gcn_norm on very deep stacks.
    bs, n, f_in = x.shape
    hid = params["proj_w"].shape[0]

    mm_bytes = np.dtype(matmul_dtype).itemsize
    p_bytes = np.dtype(prop_dtype).itemsize

    # ---- per-generation tile selection (v7x: 64 MiB VMEM, 2 TensorCores) ----
    vmem_cap = _vmem_capacity_bytes()
    weight_bytes = ((f_in * hid + hid) * mm_bytes
                    + num_layers * hid * hid * mm_bytes
                    + num_layers * 3 * hid * 4
                    + (hid + 1) * 4)

    def step_bytes(bt):
        rows = bt * n
        return (2 * bt * n * n * p_bytes        # double-buffered P stream
                + 2 * rows * f_in * mm_bytes    # double-buffered x stream
                + 2 * bt * n * 4                # double-buffered output
                + 6 * rows * hid * 4            # h / z / agg / LN temporaries
                + weight_bytes)                 # single-buffered weights

    budget = int(vmem_cap * 0.7)
    fits = lambda bt: bt * n <= target_rows and step_bytes(bt) <= budget
    bt = _pick_batch_tile(bs, n, fits, min_grid=_num_tensorcores())
    rows = bt * n
    grid_b = bs // bt

    vmem_limit = int(max(step_bytes(bt) * 1.25, 32 << 20))
    vmem_limit = min(vmem_limit, max(32 << 20, int(vmem_cap * 0.85)))

    # ---- hoisted preprocessing (cheap layout plumbing / one-off XLA math) ----
    p = _normalized_adjacency(adj).astype(prop_dtype)                     # [B, N, N]
    x_flat = x.reshape(bs * n, f_in).astype(matmul_dtype)                 # [B*N, F]
    proj_w = params["proj_w"].T.astype(matmul_dtype)                      # [F, H]
    conv_w = jnp.swapaxes(params["conv_w"], -1, -2).astype(matmul_dtype)  # [L, H, H]

    cost = pl.CostEstimate(
        flops=int(2 * bs * n * (f_in * hid
                                + num_layers * (hid * hid + n * hid)
                                + hid)),
        transcendentals=int(bs * n * num_layers),
        bytes_accessed=int(bs * n * f_in * mm_bytes
                           + bs * n * n * p_bytes
                           + bs * n * 4
                           + weight_bytes))

    kernel = functools.partial(_deep_gcn_kernel, num_layers=num_layers)

    def run(buffer_weights_once):
        # Invariant parameters: constant index_map; Buffered(1) avoids wasting
        # VMEM on a second buffer (most valuable under v7x's 64 MiB budget).
        pm = {"pipeline_mode": pl.Buffered(1)} if buffer_weights_once else {}

        def wspec(shape):
            nd = len(shape)
            return pl.BlockSpec(shape, lambda b, _nd=nd: (0,) * _nd, **pm)

        return pl.pallas_call(
            kernel,
            out_shape=jax.ShapeDtypeStruct((bs, n), jnp.float32),
            grid=(grid_b,),
            in_specs=[
                pl.BlockSpec((rows, f_in), lambda b: (b, 0)),     # x (flattened)
                pl.BlockSpec((bt, n, n), lambda b: (b, 0, 0)),    # P
                wspec((f_in, hid)),                               # proj W [F,H]
                wspec((1, hid)),                                  # proj b
                wspec((num_layers, 1, hid)),                      # LN gamma
                wspec((num_layers, 1, hid)),                      # LN beta
                wspec((num_layers, hid, hid)),                    # GCN W [in,out]
                wspec((num_layers, 1, hid)),                      # GCN b
                wspec((1, hid)),                                  # pred W (f32)
                wspec((1, 1)),                                    # pred b (f32)
            ],
            out_specs=pl.BlockSpec((bt, n), lambda b: (b, 0)),    # predictions
            compiler_params=pltpu.CompilerParams(
                dimension_semantics=("parallel",),
                vmem_limit_bytes=vmem_limit),
            cost_estimate=cost,
            # TODO(synk): for realistic N (>~2048) the dense [bt, n, n] P block
            # dominates VMEM; add node-tile grid axes (output rows "parallel",
            # neighbour/contraction axis last + "arbitrary" with a VMEM
            # accumulator finalized via pl.when) instead of shrinking bt.
        )(x_flat, p, proj_w, params["proj_b"], params["ln_g"], params["ln_b"],
          conv_w, params["conv_b"], params["pred_w"], params["pred_b"])

    try:
        out = run(True)
    except Exception:   # pragma: no cover - jax without BlockSpec pipeline_mode
        out = run(False)

    return out[..., None]             # [B, N, 1]; pred bias already applied


def deep_gcn_reference(x, adj, params, num_layers, *,
                       matmul_dtype=jnp.bfloat16, prop_dtype=jnp.bfloat16):
    """Pure-JAX reference of the same forward semantics, mirroring the kernel's
    mixed precision (bf16 matmul inputs, f32 accumulation / elementwise)."""
    p = _normalized_adjacency(adj).astype(prop_dtype)
    proj_w = params["proj_w"].T.astype(matmul_dtype)
    conv_w = jnp.swapaxes(params["conv_w"], -1, -2).astype(matmul_dtype)
    h = jnp.einsum("bnf,fh->bnh", x.astype(matmul_dtype), proj_w,
                   preferred_element_type=jnp.float32) + params["proj_b"][0]
    for l in range(num_layers):
        mean = h.mean(-1, keepdims=True)
        var = jnp.square(h - mean).mean(-1, keepdims=True)
        z = (h - mean) * lax.rsqrt(var + LN_EPS)
        z = z * params["ln_g"][l] + params["ln_b"][l]
        z = jnp.maximum(z, 0.0)
        z = jnp.einsum("bnh,hk->bnk", z.astype(matmul_dtype), conv_w[l],
                       preferred_element_type=jnp.float32)
        agg = jnp.einsum("bij,bjh->bih", p, z.astype(prop_dtype),
                         preferred_element_type=jnp.float32)
        h = h + agg + params["conv_b"][l]
    return jnp.einsum("bnh,oh->bno", h, params["pred_w"]) + params["pred_b"][0]


if __name__ == "__main__":
    # Small shapes consistent with the module.
    BS, N, F_IN, HID, L = 2, 16, 8, 32, 2

    key = jax.random.PRNGKey(0)
    keys = jax.random.split(key, 10)

    # Deterministic synthetic parameters (torch-like shapes).
    params = {
        "proj_w": 0.1 * jax.random.normal(keys[0], (HID, F_IN), jnp.float32),
        "proj_b": 0.1 * jax.random.normal(keys[1], (1, HID), jnp.float32),
        "ln_g":   1.0 + 0.05 * jax.random.normal(keys[2], (L, 1, HID), jnp.float32),
        "ln_b":   0.05 * jax.random.normal(keys[3], (L, 1, HID), jnp.float32),
        "conv_w": 0.1 * jax.random.normal(keys[4], (L, HID, HID), jnp.float32),
        "conv_b": 0.1 * jax.random.normal(keys[5], (L, 1, HID), jnp.float32),
        "pred_w": 0.1 * jax.random.normal(keys[6], (1, HID), jnp.float32),
        "pred_b": 0.1 * jax.random.normal(keys[7], (1, 1), jnp.float32),
    }

    x = jax.random.normal(keys[8], (BS, N, F_IN), jnp.float32)
    adj = (jax.random.uniform(keys[9], (BS, N, N)) > 0.6).astype(jnp.float32)

    out = jax.block_until_ready(deep_gcn_forward(x, adj, params, L))
    ref = deep_gcn_reference(x, adj, params, L)

    assert out.shape == (BS, N, 1), out.shape
    max_err = float(jnp.abs(out - ref).max())
    assert jnp.allclose(out, ref, atol=2e-3, rtol=2e-3), max_err

    print("KERNEL_OK")
</pallas_src>

<mosaic_0001>
module attributes {stable_mosaic.version = 11 : i64} {
  func.func @_deep_gcn_kernel(%arg0: i32, %arg1: memref<32x8xbf16, #tpu.memory_space<vmem>>, %arg2: memref<2x16x16xbf16, #tpu.memory_space<vmem>>, %arg3: memref<8x32xbf16, #tpu.memory_space<vmem>>, %arg4: memref<1x32xf32, #tpu.memory_space<vmem>>, %arg5: memref<2x1x32xf32, #tpu.memory_space<vmem>>, %arg6: memref<2x1x32xf32, #tpu.memory_space<vmem>>, %arg7: memref<2x32x32xbf16, #tpu.memory_space<vmem>>, %arg8: memref<2x1x32xf32, #tpu.memory_space<vmem>>, %arg9: memref<1x32xf32, #tpu.memory_space<vmem>>, %arg10: memref<1x1xf32, #tpu.memory_space<vmem>>, %arg11: memref<2x16xf32, #tpu.memory_space<vmem>>) attributes {dimension_semantics = [#tpu.dimension_semantics<parallel>], iteration_bounds = array<i64: 1>, scalar_prefetch = 0 : i64, scratch_operands = 0 : i64, tpu.core_type = #tpu.core_type<tc>, window_params = [{transform_indices = @transform_0, window_bounds = array<i64: 32, 8>}, {transform_indices = @transform_1, window_bounds = array<i64: 2, 16, 16>}, {pipeline_mode = #tpu.pipeline_mode<synchronous>, transform_indices = @transform_2, window_bounds = array<i64: 8, 32>}, {pipeline_mode = #tpu.pipeline_mode<synchronous>, transform_indices = @transform_3, window_bounds = array<i64: 1, 32>}, {pipeline_mode = #tpu.pipeline_mode<synchronous>, transform_indices = @transform_4, window_bounds = array<i64: 2, 1, 32>}, {pipeline_mode = #tpu.pipeline_mode<synchronous>, transform_indices = @transform_5, window_bounds = array<i64: 2, 1, 32>}, {pipeline_mode = #tpu.pipeline_mode<synchronous>, transform_indices = @transform_6, window_bounds = array<i64: 2, 32, 32>}, {pipeline_mode = #tpu.pipeline_mode<synchronous>, transform_indices = @transform_7, window_bounds = array<i64: 2, 1, 32>}, {pipeline_mode = #tpu.pipeline_mode<synchronous>, transform_indices = @transform_8, window_bounds = array<i64: 1, 32>}, {pipeline_mode = #tpu.pipeline_mode<synchronous>, transform_indices = @transform_9, window_bounds = array<i64: 1, 1>}, {transform_indices = @transform_10, window_bounds = array<i64: 2, 16>}]} {
    %c0 = arith.constant 0 : index
    %c0_0 = arith.constant 0 : index
    %0 = vector.load %arg1[%c0, %c0_0] : memref<32x8xbf16, #tpu.memory_space<vmem>>, vector<32x8xbf16>
    %c0_1 = arith.constant 0 : index
    %c0_2 = arith.constant 0 : index
    %1 = vector.load %arg3[%c0_1, %c0_2] : memref<8x32xbf16, #tpu.memory_space<vmem>>, vector<8x32xbf16>
    %cst = arith.constant dense<0.000000e+00> : vector<32x32xf32>
    %2 = tpu.matmul %0, %1, %cst {dimension_numbers = #tpu.dot_dimension_numbers<[1], [0], [0], [1], [0, 0, 1, 1], [], []>} : vector<32x8xbf16>, vector<8x32xbf16>, vector<32x32xf32> -> vector<32x32xf32>
    %c0_3 = arith.constant 0 : index
    %c0_4 = arith.constant 0 : index
    %3 = vector.load %arg4[%c0_3, %c0_4] : memref<1x32xf32, #tpu.memory_space<vmem>>, vector<1x32xf32>
    %4 = vector.broadcast %3 : vector<1x32xf32> to vector<32x32xf32>
    %5 = arith.addf %2, %4 : vector<32x32xf32>
    %c0_5 = arith.constant 0 : index
    %c0_6 = arith.constant 0 : index
    %c0_7 = arith.constant 0 : index
    %6 = vector.load %arg2[%c0_5, %c0_6, %c0_7] : memref<2x16x16xbf16, #tpu.memory_space<vmem>>, vector<2x16x16xbf16>
    %cst_8 = arith.constant dense<0.000000e+00> : vector<32xf32>
    %7 = vector.multi_reduction <add>, %5, %cst_8 [1] : vector<32x32xf32> to vector<32xf32>
    %8 = vector.shape_cast %7 : vector<32xf32> to vector<32x1xf32>
    %9 = arith.mulf %5, %5 : vector<32x32xf32>
    %cst_9 = arith.constant dense<0.000000e+00> : vector<32xf32>
    %10 = vector.multi_reduction <add>, %9, %cst_9 [1] : vector<32x32xf32> to vector<32xf32>
    %11 = vector.shape_cast %10 : vector<32xf32> to vector<32x1xf32>
    %cst_10 = arith.constant 3.125000e-02 : f32
    %12 = vector.broadcast %cst_10 : f32 to vector<32x1xf32>
    %13 = arith.mulf %8, %12 : vector<32x1xf32>
    %cst_11 = arith.constant 3.125000e-02 : f32
    %14 = vector.broadcast %cst_11 : f32 to vector<32x1xf32>
    %15 = arith.mulf %11, %14 : vector<32x1xf32>
    %16 = arith.mulf %13, %13 : vector<32x1xf32>
    %17 = arith.subf %15, %16 : vector<32x1xf32>
    %cst_12 = arith.constant 0.000000e+00 : f32
    %18 = vector.broadcast %cst_12 : f32 to vector<32x1xf32>
    %19 = arith.maximumf %17, %18 : vector<32x1xf32>
    %20 = vector.broadcast %13 : vector<32x1xf32> to vector<32x32xf32>
    %21 = arith.subf %5, %20 : vector<32x32xf32>
    %cst_13 = arith.constant 9.99999974E-6 : f32
    %22 = vector.broadcast %cst_13 : f32 to vector<32x1xf32>
    %23 = arith.addf %19, %22 : vector<32x1xf32>
    %24 = math.rsqrt %23 : vector<32x1xf32>
    %25 = vector.broadcast %24 : vector<32x1xf32> to vector<32x32xf32>
    %26 = arith.mulf %21, %25 : vector<32x32xf32>
    %c0_14 = arith.constant 0 : index
    %c0_15 = arith.constant 0 : index
    %c0_16 = arith.constant 0 : index
    %27 = vector.load %arg5[%c0_14, %c0_15, %c0_16] : memref<2x1x32xf32, #tpu.memory_space<vmem>>, vector<1x1x32xf32>
    %28 = vector.shape_cast %27 : vector<1x1x32xf32> to vector<1x32xf32>
    %29 = vector.broadcast %28 : vector<1x32xf32> to vector<32x32xf32>
    %30 = arith.mulf %26, %29 : vector<32x32xf32>
    %c0_17 = arith.constant 0 : index
    %c0_18 = arith.constant 0 : index
    %c0_19 = arith.constant 0 : index
    %31 = vector.load %arg6[%c0_17, %c0_18, %c0_19] : memref<2x1x32xf32, #tpu.memory_space<vmem>>, vector<1x1x32xf32>
    %32 = vector.shape_cast %31 : vector<1x1x32xf32> to vector<1x32xf32>
    %33 = vector.broadcast %32 : vector<1x32xf32> to vector<32x32xf32>
    %34 = arith.addf %30, %33 : vector<32x32xf32>
    %cst_20 = arith.constant 0.000000e+00 : f32
    %35 = vector.broadcast %cst_20 : f32 to vector<32x32xf32>
    %36 = arith.maximumf %34, %35 : vector<32x32xf32>
    %37 = arith.truncf %36 : vector<32x32xf32> to vector<32x32xbf16>
    %c0_21 = arith.constant 0 : index
    %c0_22 = arith.constant 0 : index
    %c0_23 = arith.constant 0 : index
    %38 = vector.load %arg7[%c0_21, %c0_22, %c0_23] : memref<2x32x32xbf16, #tpu.memory_space<vmem>>, vector<1x32x32xbf16>
    %39 = vector.shape_cast %38 : vector<1x32x32xbf16> to vector<32x32xbf16>
    %cst_24 = arith.constant dense<0.000000e+00> : vector<32x32xf32>
    %40 = tpu.matmul %37, %39, %cst_24 {dimension_numbers = #tpu.dot_dimension_numbers<[1], [0], [0], [1], [0, 0, 1, 1], [], []>} : vector<32x32xbf16>, vector<32x32xbf16>, vector<32x32xf32> -> vector<32x32xf32>
    %41 = vector.shape_cast %40 : vector<32x32xf32> to vector<2x16x32xf32>
    %42 = arith.truncf %41 : vector<2x16x32xf32> to vector<2x16x32xbf16>
    "tpu.trace_start"() <{level = 10 : i32, message = "bij,bjh->bih"}> : () -> ()
    %cst_25 = arith.constant dense<0.000000e+00> : vector<2x16x32xf32>
    %43 = tpu.matmul %6, %42, %cst_25 {dimension_numbers = #tpu.dot_dimension_numbers<[2], [1], [1], [2], [0, 0, 0, 1, 1, 2], [0], [0]>} : vector<2x16x16xbf16>, vector<2x16x32xbf16>, vector<2x16x32xf32> -> vector<2x16x32xf32>
    "tpu.trace_stop"() : () -> ()
    %44 = vector.shape_cast %43 : vector<2x16x32xf32> to vector<32x32xf32>
    %45 = arith.addf %5, %44 : vector<32x32xf32>
    %c0_26 = arith.constant 0 : index
    %c0_27 = arith.constant 0 : index
    %c0_28 = arith.constant 0 : index
    %46 = vector.load %arg8[%c0_26, %c0_27, %c0_28] : memref<2x1x32xf32, #tpu.memory_space<vmem>>, vector<1x1x32xf32>
    %47 = vector.shape_cast %46 : vector<1x1x32xf32> to vector<1x32xf32>
    %48 = vector.broadcast %47 : vector<1x32xf32> to vector<32x32xf32>
    %49 = arith.addf %45, %48 : vector<32x32xf32>
    %cst_29 = arith.constant dense<0.000000e+00> : vector<32xf32>
    %50 = vector.multi_reduction <add>, %49, %cst_29 [1] : vector<32x32xf32> to vector<32xf32>
    %51 = vector.shape_cast %50 : vector<32xf32> to vector<32x1xf32>
    %52 = arith.mulf %49, %49 : vector<32x32xf32>
    %cst_30 = arith.constant dense<0.000000e+00> : vector<32xf32>
    %53 = vector.multi_reduction <add>, %52, %cst_30 [1] : vector<32x32xf32> to vector<32xf32>
    %54 = vector.shape_cast %53 : vector<32xf32> to vector<32x1xf32>
    %cst_31 = arith.constant 3.125000e-02 : f32
    %55 = vector.broadcast %cst_31 : f32 to vector<32x1xf32>
    %56 = arith.mulf %51, %55 : vector<32x1xf32>
    %cst_32 = arith.constant 3.125000e-02 : f32
    %57 = vector.broadcast %cst_32 : f32 to vector<32x1xf32>
    %58 = arith.mulf %54, %57 : vector<32x1xf32>
    %59 = arith.mulf %56, %56 : vector<32x1xf32>
    %60 = arith.subf %58, %59 : vector<32x1xf32>
    %cst_33 = arith.constant 0.000000e+00 : f32
    %61 = vector.broadcast %cst_33 : f32 to vector<32x1xf32>
    %62 = arith.maximumf %60, %61 : vector<32x1xf32>
    %63 = vector.broadcast %56 : vector<32x1xf32> to vector<32x32xf32>
    %64 = arith.subf %49, %63 : vector<32x32xf32>
    %cst_34 = arith.constant 9.99999974E-6 : f32
    %65 = vector.broadcast %cst_34 : f32 to vector<32x1xf32>
    %66 = arith.addf %62, %65 : vector<32x1xf32>
    %67 = math.rsqrt %66 : vector<32x1xf32>
    %68 = vector.broadcast %67 : vector<32x1xf32> to vector<32x32xf32>
    %69 = arith.mulf %64, %68 : vector<32x32xf32>
    %c1 = arith.constant 1 : index
    %c0_35 = arith.constant 0 : index
    %c0_36 = arith.constant 0 : index
    %70 = vector.load %arg5[%c1, %c0_35, %c0_36] : memref<2x1x32xf32, #tpu.memory_space<vmem>>, vector<1x1x32xf32>
    %71 = vector.shape_cast %70 : vector<1x1x32xf32> to vector<1x32xf32>
    %72 = vector.broadcast %71 : vector<1x32xf32> to vector<32x32xf32>
    %73 = arith.mulf %69, %72 : vector<32x32xf32>
    %c1_37 = arith.constant 1 : index
    %c0_38 = arith.constant 0 : index
    %c0_39 = arith.constant 0 : index
    %74 = vector.load %arg6[%c1_37, %c0_38, %c0_39] : memref<2x1x32xf32, #tpu.memory_space<vmem>>, vector<1x1x32xf32>
    %75 = vector.shape_cast %74 : vector<1x1x32xf32> to vector<1x32xf32>
    %76 = vector.broadcast %75 : vector<1x32xf32> to vector<32x32xf32>
    %77 = arith.addf %73, %76 : vector<32x32xf32>
    %cst_40 = arith.constant 0.000000e+00 : f32
    %78 = vector.broadcast %cst_40 : f32 to vector<32x32xf32>
    %79 = arith.maximumf %77, %78 : vector<32x32xf32>
    %80 = arith.truncf %79 : vector<32x32xf32> to vector<32x32xbf16>
    %c1_41 = arith.constant 1 : index
    %c0_42 = arith.constant 0 : index
    %c0_43 = arith.constant 0 : index
    %81 = vector.load %arg7[%c1_41, %c0_42, %c0_43] : memref<2x32x32xbf16, #tpu.memory_space<vmem>>, vector<1x32x32xbf16>
    %82 = vector.shape_cast %81 : vector<1x32x32xbf16> to vector<32x32xbf16>
    %cst_44 = arith.constant dense<0.000000e+00> : vector<32x32xf32>
    %83 = tpu.matmul %80, %82, %cst_44 {dimension_numbers = #tpu.dot_dimension_numbers<[1], [0], [0], [1], [0, 0, 1, 1], [], []>} : vector<32x32xbf16>, vector<32x32xbf16>, vector<32x32xf32> -> vector<32x32xf32>
    %84 = vector.shape_cast %83 : vector<32x32xf32> to vector<2x16x32xf32>
    %85 = arith.truncf %84 : vector<2x16x32xf32> to vector<2x16x32xbf16>
    "tpu.trace_start"() <{level = 10 : i32, message = "bij,bjh->bih"}> : () -> ()
    %cst_45 = arith.constant dense<0.000000e+00> : vector<2x16x32xf32>
    %86 = tpu.matmul %6, %85, %cst_45 {dimension_numbers = #tpu.dot_dimension_numbers<[2], [1], [1], [2], [0, 0, 0, 1, 1, 2], [0], [0]>} : vector<2x16x16xbf16>, vector<2x16x32xbf16>, vector<2x16x32xf32> -> vector<2x16x32xf32>
    "tpu.trace_stop"() : () -> ()
    %87 = vector.shape_cast %86 : vector<2x16x32xf32> to vector<32x32xf32>
    %88 = arith.addf %49, %87 : vector<32x32xf32>
    %c1_46 = arith.constant 1 : index
    %c0_47 = arith.constant 0 : index
    %c0_48 = arith.constant 0 : index
    %89 = vector.load %arg8[%c1_46, %c0_47, %c0_48] : memref<2x1x32xf32, #tpu.memory_space<vmem>>, vector<1x1x32xf32>
    %90 = vector.shape_cast %89 : vector<1x1x32xf32> to vector<1x32xf32>
    %91 = vector.broadcast %90 : vector<1x32xf32> to vector<32x32xf32>
    %92 = arith.addf %88, %91 : vector<32x32xf32>
    %93 = vector.shape_cast %92 : vector<32x32xf32> to vector<2x16x32xf32>
    %c0_49 = arith.constant 0 : index
    %c0_50 = arith.constant 0 : index
    %94 = vector.load %arg9[%c0_49, %c0_50] : memref<1x32xf32, #tpu.memory_space<vmem>>, vector<1x32xf32>
    %95 = vector.shape_cast %94 : vector<1x32xf32> to vector<1x1x32xf32>
    %96 = vector.broadcast %95 : vector<1x1x32xf32> to vector<2x16x32xf32>
    %97 = arith.mulf %93, %96 : vector<2x16x32xf32>
    %cst_51 = arith.constant dense<0.000000e+00> : vector<2x16xf32>
    %98 = vector.multi_reduction <add>, %97, %cst_51 [2] : vector<2x16x32xf32> to vector<2x16xf32>
    %c0_52 = arith.constant 0 : index
    %c0_53 = arith.constant 0 : index
    %99 = vector.load %arg10[%c0_52, %c0_53] : memref<1x1xf32, #tpu.memory_space<vmem>>, vector<1x1xf32>
    %100 = vector.extract %99[0, 0] : f32 from vector<1x1xf32>
    %101 = vector.broadcast %100 : f32 to vector<2x16xf32>
    %102 = arith.addf %98, %101 : vector<2x16xf32>
    %c0_54 = arith.constant 0 : index
    %c0_55 = arith.constant 0 : index
    %103 = vector.load %arg11[%c0_54, %c0_55] : memref<2x16xf32, #tpu.memory_space<vmem>>, vector<2x16xf32>
    tpu.vector_store %arg11[%c0_54, %c0_55], %102 {strides = array<i32>} : memref<2x16xf32, #tpu.memory_space<vmem>>, vector<2x16xf32>,
    return
  }
  func.func @transform_0(%arg0: i32) -> (i32, i32) {
    %c0_i32 = arith.constant 0 : i32
    %c0_i32_0 = arith.constant 0 : i32
    return %arg0, %c0_i32 : i32, i32
  }
  func.func @transform_1(%arg0: i32) -> (i32, i32, i32) {
    %c0_i32 = arith.constant 0 : i32
    %c0_i32_0 = arith.constant 0 : i32
    %c0_i32_1 = arith.constant 0 : i32
    return %arg0, %c0_i32, %c0_i32_0 : i32, i32, i32
  }
  func.func @transform_2(%arg0: i32) -> (i32, i32) {
    %c0_i32 = arith.constant 0 : i32
    %c0_i32_0 = arith.constant 0 : i32
    %c0_i32_1 = arith.constant 0 : i32
    return %c0_i32, %c0_i32_0 : i32, i32
  }
  func.func @transform_3(%arg0: i32) -> (i32, i32) {
    %c0_i32 = arith.constant 0 : i32
    %c0_i32_0 = arith.constant 0 : i32
    %c0_i32_1 = arith.constant 0 : i32
    return %c0_i32, %c0_i32_0 : i32, i32
  }
  func.func @transform_4(%arg0: i32) -> (i32, i32, i32) {
    %c0_i32 = arith.constant 0 : i32
    %c0_i32_0 = arith.constant 0 : i32
    %c0_i32_1 = arith.constant 0 : i32
    %c0_i32_2 = arith.constant 0 : i32
    return %c0_i32, %c0_i32_0, %c0_i32_1 : i32, i32, i32
  }
  func.func @transform_5(%arg0: i32) -> (i32, i32, i32) {
    %c0_i32 = arith.constant 0 : i32
    %c0_i32_0 = arith.constant 0 : i32
    %c0_i32_1 = arith.constant 0 : i32
    %c0_i32_2 = arith.constant 0 : i32
    return %c0_i32, %c0_i32_0, %c0_i32_1 : i32, i32, i32
  }
  func.func @transform_6(%arg0: i32) -> (i32, i32, i32) {
    %c0_i32 = arith.constant 0 : i32
    %c0_i32_0 = arith.constant 0 : i32
    %c0_i32_1 = arith.constant 0 : i32
    %c0_i32_2 = arith.constant 0 : i32
    return %c0_i32, %c0_i32_0, %c0_i32_1 : i32, i32, i32
  }
  func.func @transform_7(%arg0: i32) -> (i32, i32, i32) {
    %c0_i32 = arith.constant 0 : i32
    %c0_i32_0 = arith.constant 0 : i32
    %c0_i32_1 = arith.constant 0 : i32
    %c0_i32_2 = arith.constant 0 : i32
    return %c0_i32, %c0_i32_0, %c0_i32_1 : i32, i32, i32
  }
  func.func @transform_8(%arg0: i32) -> (i32, i32) {
    %c0_i32 = arith.constant 0 : i32
    %c0_i32_0 = arith.constant 0 : i32
    %c0_i32_1 = arith.constant 0 : i32
    return %c0_i32, %c0_i32_0 : i32, i32
  }
  func.func @transform_9(%arg0: i32) -> (i32, i32) {
    %c0_i32 = arith.constant 0 : i32
    %c0_i32_0 = arith.constant 0 : i32
    %c0_i32_1 = arith.constant 0 : i32
    return %c0_i32, %c0_i32_0 : i32, i32
  }
  func.func @transform_10(%arg0: i32) -> (i32, i32) {
    %c0_i32 = arith.constant 0 : i32
    %c0_i32_0 = arith.constant 0 : i32
    return %arg0, %c0_i32 : i32, i32
  }
}

module attributes {stable_mosaic.version = 11 : i64} {
  func.func @_deep_gcn_kernel(%arg0: i32, %arg1: memref<32x8xbf16, #tpu.memory_space<vmem>>, %arg2: memref<2x16x16xbf16, #tpu.memory_space<vmem>>, %arg3: memref<8x32xbf16, #tpu.memory_space<vmem>>, %arg4: memref<1x32xf32, #tpu.memory_space<vmem>>, %arg5: memref<2x1x32xf32, #tpu.memory_space<vmem>>, %arg6: memref<2x1x32xf32, #tpu.memory_space<vmem>>, %arg7: memref<2x32x32xbf16, #tpu.memory_space<vmem>>, %arg8: memref<2x1x32xf32, #tpu.memory_space<vmem>>, %arg9: memref<1x32xf32, #tpu.memory_space<vmem>>, %arg10: memref<1x1xf32, #tpu.memory_space<vmem>>, %arg11: memref<2x16xf32, #tpu.memory_space<vmem>>) attributes {dimension_semantics = [#tpu.dimension_semantics<parallel>], iteration_bounds = array<i64: 1>, scalar_prefetch = 0 : i64, scratch_operands = 0 : i64, tpu.core_type = #tpu.core_type<tc>, window_params = [{transform_indices = @transform_0, window_bounds = array<i64: 32, 8>}, {transform_indices = @transform_1, window_bounds = array<i64: 2, 16, 16>}, {pipeline_mode = #tpu.pipeline_mode<synchronous>, transform_indices = @transform_2, window_bounds = array<i64: 8, 32>}, {pipeline_mode = #tpu.pipeline_mode<synchronous>, transform_indices = @transform_3, window_bounds = array<i64: 1, 32>}, {pipeline_mode = #tpu.pipeline_mode<synchronous>, transform_indices = @transform_4, window_bounds = array<i64: 2, 1, 32>}, {pipeline_mode = #tpu.pipeline_mode<synchronous>, transform_indices = @transform_5, window_bounds = array<i64: 2, 1, 32>}, {pipeline_mode = #tpu.pipeline_mode<synchronous>, transform_indices = @transform_6, window_bounds = array<i64: 2, 32, 32>}, {pipeline_mode = #tpu.pipeline_mode<synchronous>, transform_indices = @transform_7, window_bounds = array<i64: 2, 1, 32>}, {pipeline_mode = #tpu.pipeline_mode<synchronous>, transform_indices = @transform_8, window_bounds = array<i64: 1, 32>}, {pipeline_mode = #tpu.pipeline_mode<synchronous>, transform_indices = @transform_9, window_bounds = array<i64: 1, 1>}, {transform_indices = @transform_10, window_bounds = array<i64: 2, 16>}]} {
    %c0 = arith.constant 0 : index
    %c0_0 = arith.constant 0 : index
    %0 = vector.load %arg1[%c0, %c0_0] : memref<32x8xbf16, #tpu.memory_space<vmem>>, vector<32x8xbf16>
    %c0_1 = arith.constant 0 : index
    %c0_2 = arith.constant 0 : index
    %1 = vector.load %arg3[%c0_1, %c0_2] : memref<8x32xbf16, #tpu.memory_space<vmem>>, vector<8x32xbf16>
    %cst = arith.constant dense<0.000000e+00> : vector<32x32xf32>
    %2 = tpu.matmul %0, %1, %cst {dimension_numbers = #tpu.dot_dimension_numbers<[1], [0], [0], [1], [0, 0, 1, 1], [], []>} : vector<32x8xbf16>, vector<8x32xbf16>, vector<32x32xf32> -> vector<32x32xf32>
    %c0_3 = arith.constant 0 : index
    %c0_4 = arith.constant 0 : index
    %3 = vector.load %arg4[%c0_3, %c0_4] : memref<1x32xf32, #tpu.memory_space<vmem>>, vector<1x32xf32>
    %4 = vector.broadcast %3 : vector<1x32xf32> to vector<32x32xf32>
    %5 = arith.addf %2, %4 : vector<32x32xf32>
    %c0_5 = arith.constant 0 : index
    %c0_6 = arith.constant 0 : index
    %c0_7 = arith.constant 0 : index
    %6 = vector.load %arg2[%c0_5, %c0_6, %c0_7] : memref<2x16x16xbf16, #tpu.memory_space<vmem>>, vector<2x16x16xbf16>
    %cst_8 = arith.constant dense<0.000000e+00> : vector<32xf32>
    %7 = vector.multi_reduction <add>, %5, %cst_8 [1] : vector<32x32xf32> to vector<32xf32>
    %8 = vector.shape_cast %7 : vector<32xf32> to vector<32x1xf32>
    %9 = arith.mulf %5, %5 : vector<32x32xf32>
    %cst_9 = arith.constant dense<0.000000e+00> : vector<32xf32>
    %10 = vector.multi_reduction <add>, %9, %cst_9 [1] : vector<32x32xf32> to vector<32xf32>
    %11 = vector.shape_cast %10 : vector<32xf32> to vector<32x1xf32>
    %cst_10 = arith.constant 3.125000e-02 : f32
    %12 = vector.broadcast %cst_10 : f32 to vector<32x1xf32>
    %13 = arith.mulf %8, %12 : vector<32x1xf32>
    %cst_11 = arith.constant 3.125000e-02 : f32
    %14 = vector.broadcast %cst_11 : f32 to vector<32x1xf32>
    %15 = arith.mulf %11, %14 : vector<32x1xf32>
    %16 = arith.mulf %13, %13 : vector<32x1xf32>
    %17 = arith.subf %15, %16 : vector<32x1xf32>
    %cst_12 = arith.constant 0.000000e+00 : f32
    %18 = vector.broadcast %cst_12 : f32 to vector<32x1xf32>
    %19 = arith.maximumf %17, %18 : vector<32x1xf32>
    %20 = vector.broadcast %13 : vector<32x1xf32> to vector<32x32xf32>
    %21 = arith.subf %5, %20 : vector<32x32xf32>
    %cst_13 = arith.constant 9.99999974E-6 : f32
    %22 = vector.broadcast %cst_13 : f32 to vector<32x1xf32>
    %23 = arith.addf %19, %22 : vector<32x1xf32>
    %24 = math.rsqrt %23 : vector<32x1xf32>
    %25 = vector.broadcast %24 : vector<32x1xf32> to vector<32x32xf32>
    %26 = arith.mulf %21, %25 : vector<32x32xf32>
    %c0_14 = arith.constant 0 : index
    %c0_15 = arith.constant 0 : index
    %c0_16 = arith.constant 0 : index
    %27 = vector.load %arg5[%c0_14, %c0_15, %c0_16] : memref<2x1x32xf32, #tpu.memory_space<vmem>>, vector<1x1x32xf32>
    %28 = vector.shape_cast %27 : vector<1x1x32xf32> to vector<1x32xf32>
    %29 = vector.broadcast %28 : vector<1x32xf32> to vector<32x32xf32>
    %30 = arith.mulf %26, %29 : vector<32x32xf32>
    %c0_17 = arith.constant 0 : index
    %c0_18 = arith.constant 0 : index
    %c0_19 = arith.constant 0 : index
    %31 = vector.load %arg6[%c0_17, %c0_18, %c0_19] : memref<2x1x32xf32, #tpu.memory_space<vmem>>, vector<1x1x32xf32>
    %32 = vector.shape_cast %31 : vector<1x1x32xf32> to vector<1x32xf32>
    %33 = vector.broadcast %32 : vector<1x32xf32> to vector<32x32xf32>
    %34 = arith.addf %30, %33 : vector<32x32xf32>
    %cst_20 = arith.constant 0.000000e+00 : f32
    %35 = vector.broadcast %cst_20 : f32 to vector<32x32xf32>
    %36 = arith.maximumf %34, %35 : vector<32x32xf32>
    %37 = arith.truncf %36 : vector<32x32xf32> to vector<32x32xbf16>
    %c0_21 = arith.constant 0 : index
    %c0_22 = arith.constant 0 : index
    %c0_23 = arith.constant 0 : index
    %38 = vector.load %arg7[%c0_21, %c0_22, %c0_23] : memref<2x32x32xbf16, #tpu.memory_space<vmem>>, vector<1x32x32xbf16>
    %39 = vector.shape_cast %38 : vector<1x32x32xbf16> to vector<32x32xbf16>
    %cst_24 = arith.constant dense<0.000000e+00> : vector<32x32xf32>
    %40 = tpu.matmul %37, %39, %cst_24 {dimension_numbers = #tpu.dot_dimension_numbers<[1], [0], [0], [1], [0, 0, 1, 1], [], []>} : vector<32x32xbf16>, vector<32x32xbf16>, vector<32x32xf32> -> vector<32x32xf32>
    %41 = vector.shape_cast %40 : vector<32x32xf32> to vector<2x16x32xf32>
    %42 = arith.truncf %41 : vector<2x16x32xf32> to vector<2x16x32xbf16>
    "tpu.trace_start"() <{level = 10 : i32, message = "bij,bjh->bih"}> : () -> ()
    %cst_25 = arith.constant dense<0.000000e+00> : vector<2x16x32xf32>
    %43 = tpu.matmul %6, %42, %cst_25 {dimension_numbers = #tpu.dot_dimension_numbers<[2], [1], [1], [2], [0, 0, 0, 1, 1, 2], [0], [0]>} : vector<2x16x16xbf16>, vector<2x16x32xbf16>, vector<2x16x32xf32> -> vector<2x16x32xf32>
    "tpu.trace_stop"() : () -> ()
    %44 = vector.shape_cast %43 : vector<2x16x32xf32> to vector<32x32xf32>
    %45 = arith.addf %5, %44 : vector<32x32xf32>
    %c0_26 = arith.constant 0 : index
    %c0_27 = arith.constant 0 : index
    %c0_28 = arith.constant 0 : index
    %46 = vector.load %arg8[%c0_26, %c0_27, %c0_28] : memref<2x1x32xf32, #tpu.memory_space<vmem>>, vector<1x1x32xf32>
    %47 = vector.shape_cast %46 : vector<1x1x32xf32> to vector<1x32xf32>
    %48 = vector.broadcast %47 : vector<1x32xf32> to vector<32x32xf32>
    %49 = arith.addf %45, %48 : vector<32x32xf32>
    %cst_29 = arith.constant dense<0.000000e+00> : vector<32xf32>
    %50 = vector.multi_reduction <add>, %49, %cst_29 [1] : vector<32x32xf32> to vector<32xf32>
    %51 = vector.shape_cast %50 : vector<32xf32> to vector<32x1xf32>
    %52 = arith.mulf %49, %49 : vector<32x32xf32>
    %cst_30 = arith.constant dense<0.000000e+00> : vector<32xf32>
    %53 = vector.multi_reduction <add>, %52, %cst_30 [1] : vector<32x32xf32> to vector<32xf32>
    %54 = vector.shape_cast %53 : vector<32xf32> to vector<32x1xf32>
    %cst_31 = arith.constant 3.125000e-02 : f32
    %55 = vector.broadcast %cst_31 : f32 to vector<32x1xf32>
    %56 = arith.mulf %51, %55 : vector<32x1xf32>
    %cst_32 = arith.constant 3.125000e-02 : f32
    %57 = vector.broadcast %cst_32 : f32 to vector<32x1xf32>
    %58 = arith.mulf %54, %57 : vector<32x1xf32>
    %59 = arith.mulf %56, %56 : vector<32x1xf32>
    %60 = arith.subf %58, %59 : vector<32x1xf32>
    %cst_33 = arith.constant 0.000000e+00 : f32
    %61 = vector.broadcast %cst_33 : f32 to vector<32x1xf32>
    %62 = arith.maximumf %60, %61 : vector<32x1xf32>
    %63 = vector.broadcast %56 : vector<32x1xf32> to vector<32x32xf32>
    %64 = arith.subf %49, %63 : vector<32x32xf32>
    %cst_34 = arith.constant 9.99999974E-6 : f32
    %65 = vector.broadcast %cst_34 : f32 to vector<32x1xf32>
    %66 = arith.addf %62, %65 : vector<32x1xf32>
    %67 = math.rsqrt %66 : vector<32x1xf32>
    %68 = vector.broadcast %67 : vector<32x1xf32> to vector<32x32xf32>
    %69 = arith.mulf %64, %68 : vector<32x32xf32>
    %c1 = arith.constant 1 : index
    %c0_35 = arith.constant 0 : index
    %c0_36 = arith.constant 0 : index
    %70 = vector.load %arg5[%c1, %c0_35, %c0_36] : memref<2x1x32xf32, #tpu.memory_space<vmem>>, vector<1x1x32xf32>
    %71 = vector.shape_cast %70 : vector<1x1x32xf32> to vector<1x32xf32>
    %72 = vector.broadcast %71 : vector<1x32xf32> to vector<32x32xf32>
    %73 = arith.mulf %69, %72 : vector<32x32xf32>
    %c1_37 = arith.constant 1 : index
    %c0_38 = arith.constant 0 : index
    %c0_39 = arith.constant 0 : index
    %74 = vector.load %arg6[%c1_37, %c0_38, %c0_39] : memref<2x1x32xf32, #tpu.memory_space<vmem>>, vector<1x1x32xf32>
    %75 = vector.shape_cast %74 : vector<1x1x32xf32> to vector<1x32xf32>
    %76 = vector.broadcast %75 : vector<1x32xf32> to vector<32x32xf32>
    %77 = arith.addf %73, %76 : vector<32x32xf32>
    %cst_40 = arith.constant 0.000000e+00 : f32
    %78 = vector.broadcast %cst_40 : f32 to vector<32x32xf32>
    %79 = arith.maximumf %77, %78 : vector<32x32xf32>
    %80 = arith.truncf %79 : vector<32x32xf32> to vector<32x32xbf16>
    %c1_41 = arith.constant 1 : index
    %c0_42 = arith.constant 0 : index
    %c0_43 = arith.constant 0 : index
    %81 = vector.load %arg7[%c1_41, %c0_42, %c0_43] : memref<2x32x32xbf16, #tpu.memory_space<vmem>>, vector<1x32x32xbf16>
    %82 = vector.shape_cast %81 : vector<1x32x32xbf16> to vector<32x32xbf16>
    %cst_44 = arith.constant dense<0.000000e+00> : vector<32x32xf32>
    %83 = tpu.matmul %80, %82, %cst_44 {dimension_numbers = #tpu.dot_dimension_numbers<[1], [0], [0], [1], [0, 0, 1, 1], [], []>} : vector<32x32xbf16>, vector<32x32xbf16>, vector<32x32xf32> -> vector<32x32xf32>
    %84 = vector.shape_cast %83 : vector<32x32xf32> to vector<2x16x32xf32>
    %85 = arith.truncf %84 : vector<2x16x32xf32> to vector<2x16x32xbf16>
    "tpu.trace_start"() <{level = 10 : i32, message = "bij,bjh->bih"}> : () -> ()
    %cst_45 = arith.constant dense<0.000000e+00> : vector<2x16x32xf32>
    %86 = tpu.matmul %6, %85, %cst_45 {dimension_numbers = #tpu.dot_dimension_numbers<[2], [1], [1], [2], [0, 0, 0, 1, 1, 2], [0], [0]>} : vector<2x16x16xbf16>, vector<2x16x32xbf16>, vector<2x16x32xf32> -> vector<2x16x32xf32>
    "tpu.trace_stop"() : () -> ()
    %87 = vector.shape_cast %86 : vector<2x16x32xf32> to vector<32x32xf32>
    %88 = arith.addf %49, %87 : vector<32x32xf32>
    %c1_46 = arith.constant 1 : index
    %c0_47 = arith.constant 0 : index
    %c0_48 = arith.constant 0 : index
    %89 = vector.load %arg8[%c1_46, %c0_47, %c0_48] : memref<2x1x32xf32, #tpu.memory_space<vmem>>, vector<1x1x32xf32>
    %90 = vector.shape_cast %89 : vector<1x1x32xf32> to vector<1x32xf32>
    %91 = vector.broadcast %90 : vector<1x32xf32> to vector<32x32xf32>
    %92 = arith.addf %88, %91 : vector<32x32xf32>
    %93 = vector.shape_cast %92 : vector<32x32xf32> to vector<2x16x32xf32>
    %c0_49 = arith.constant 0 : index
    %c0_50 = arith.constant 0 : index
    %94 = vector.load %arg9[%c0_49, %c0_50] : memref<1x32xf32, #tpu.memory_space<vmem>>, vector<1x32xf32>
    %95 = vector.shape_cast %94 : vector<1x32xf32> to vector<1x1x32xf32>
    %96 = vector.broadcast %95 : vector<1x1x32xf32> to vector<2x16x32xf32>
    %97 = arith.mulf %93, %96 : vector<2x16x32xf32>
    %cst_51 = arith.constant dense<0.000000e+00> : vector<2x16xf32>
    %98 = vector.multi_reduction <add>, %97, %cst_51 [2] : vector<2x16x32xf32> to vector<2x16xf32>
    %c0_52 = arith.constant 0 : index
    %c0_53 = arith.constant 0 : index
    %99 = vector.load %arg10[%c0_52, %c0_53] : memref<1x1xf32, #tpu.memory_space<vmem>>, vector<1x1xf32>
    %100 = vector.extract %99[0, 0] : f32 from vector<1x1xf32>
    %101 = vector.broadcast %100 : f32 to vector<2x16xf32>
    %102 = arith.addf %98, %101 : vector<2x16xf32>
    %c0_54 = arith.constant 0 : index
    %c0_55 = arith.constant 0 : index
    %103 = vector.load %arg11[%c0_54, %c0_55] : memref<2x16xf32, #tpu.memory_space<vmem>>, vector<2x16xf32>
    tpu.vector_store %arg11[%c0_54, %c0_55], %102 {strides = array<i32>} : memref<2x16xf32, #tpu.memory_space<vmem>>, vector<2x16xf32>,
    return
  }
  func.func @transform_0(%arg0: i32) -> (i32, i32) {
    %c0_i32 = arith.constant 0 : i32
    %c0_i32_0 = arith.constant 0 : i32
    return %arg0, %c0_i32 : i32, i32
  }
  func.func @transform_1(%arg0: i32) -> (i32, i32, i32) {
    %c0_i32 = arith.constant 0 : i32
    %c0_i32_0 = arith.constant 0 : i32
    %c0_i32_1 = arith.constant 0 : i32
    return %arg0, %c0_i32, %c0_i32_0 : i32, i32, i32
  }
  func.func @transform_2(%arg0: i32) -> (i32, i32) {
    %c0_i32 = arith.constant 0 : i32
    %c0_i32_0 = arith.constant 0 : i32
    %c0_i32_1 = arith.constant 0 : i32
    return %c0_i32, %c0_i32_0 : i32, i32
  }
  func.func @transform_3(%arg0: i32) -> (i32, i32) {
    %c0_i32 = arith.constant 0 : i32
    %c0_i32_0 = arith.constant 0 : i32
    %c0_i32_1 = arith.constant 0 : i32
    return %c0_i32, %c0_i32_0 : i32, i32
  }
  func.func @transform_4(%arg0: i32) -> (i32, i32, i32) {
    %c0_i32 = arith.constant 0 : i32
    %c0_i32_0 = arith.constant 0 : i32
    %c0_i32_1 = arith.constant 0 : i32
    %c0_i32_2 = arith.constant 0 : i32
    return %c0_i32, %c0_i32_0, %c0_i32_1 : i32, i32, i32
  }
  func.func @transform_5(%arg0: i32) -> (i32, i32, i32) {
    %c0_i32 = arith.constant 0 : i32
    %c0_i32_0 = arith.constant 0 : i32
    %c0_i32_1 = arith.constant 0 : i32
    %c0_i32_2 = arith.constant 0 : i32
    return %c0_i32, %c0_i32_0, %c0_i32_1 : i32, i32, i32
  }
  func.func @transform_6(%arg0: i32) -> (i32, i32, i32) {
    %c0_i32 = arith.constant 0 : i32
    %c0_i32_0 = arith.constant 0 : i32
    %c0_i32_1 = arith.constant 0 : i32
    %c0_i32_2 = arith.constant 0 : i32
    return %c0_i32, %c0_i32_0, %c0_i32_1 : i32, i32, i32
  }
  func.func @transform_7(%arg0: i32) -> (i32, i32, i32) {
    %c0_i32 = arith.constant 0 : i32
    %c0_i32_0 = arith.constant 0 : i32
    %c0_i32_1 = arith.constant 0 : i32
    %c0_i32_2 = arith.constant 0 : i32
    return %c0_i32, %c0_i32_0, %c0_i32_1 : i32, i32, i32
  }
  func.func @transform_8(%arg0: i32) -> (i32, i32) {
    %c0_i32 = arith.constant 0 : i32
    %c0_i32_0 = arith.constant 0 : i32
    %c0_i32_1 = arith.constant 0 : i32
    return %c0_i32, %c0_i32_0 : i32, i32
  }
  func.func @transform_9(%arg0: i32) -> (i32, i32) {
    %c0_i32 = arith.constant 0 : i32
    %c0_i32_0 = arith.constant 0 : i32
    %c0_i32_1 = arith.constant 0 : i32
    return %c0_i32, %c0_i32_0 : i32, i32
  }
  func.func @transform_10(%arg0: i32) -> (i32, i32) {
    %c0_i32 = arith.constant 0 : i32
    %c0_i32_0 = arith.constant 0 : i32
    return %arg0, %c0_i32 : i32, i32
  }
}

</mosaic_0001>

<llo_original>
// kernel: tpu_custom_call.1
$region0: #{tpu_custom_call.1}
  #allocation0 [shape = 'u32[]', space=smem, size = 0x4, offset = 0x4, fixed_abs, tag = 'smem constant byte address 0x4 - core index']
  #allocation1 [shape = 'u32[144,128]{1,0:T(1,128)}', space=vmem, size = 0x12000, scoped, tag = 'internal scratch']
  #allocation2 [shape = 'f32[1,1]{1,0:T(1,128)S(1)}', space=vmem, size = 0x200, scoped, tag = 'scoped memory for tpu_custom_call.1']
  %s0 = inlined_call_operand.vmem [shape: bf16[32,8], index: 0, kind: input, shape index: {}]
  %s1 = inlined_call_operand.hbm [shape: bf16[2,16,16], index: 1, kind: input, shape index: {}]
  %s2 = inlined_call_operand.vmem [shape: bf16[8,32], index: 2, kind: input, shape index: {}]
  %s3 = inlined_call_operand.vmem [shape: f32[1,32], index: 3, kind: input, shape index: {}]
  %s4 = inlined_call_operand.vmem [shape: f32[2,1,32], index: 4, kind: input, shape index: {}]
  %s5 = inlined_call_operand.vmem [shape: f32[2,1,32], index: 5, kind: input, shape index: {}]
  %s6 = inlined_call_operand.vmem [shape: bf16[2,32,32], index: 6, kind: input, shape index: {}]
  %s7 = inlined_call_operand.vmem [shape: f32[2,1,32], index: 7, kind: input, shape index: {}]
  %s8 = inlined_call_operand.vmem [shape: f32[1,32], index: 8, kind: input, shape index: {}]
  %s9 = inlined_call_operand.<no memory space> [shape: f32[1,1], index: 9, kind: input, shape index: {}]
  %s10 = inlined_call_operand.hbm [shape: f32[2,16], index: 10, kind: output, shape index: {}]
  %s11 = sld [smem:[#allocation0]]
  $region54: #{tpu_custom_call.1} parent=0
    _
  %s13 = ssub.s32 1, %s11
  %s14 = scalar_select 0, %s13, %s11
  %v15 = vstv %s9
  %16 = vst [vmem:[#allocation2] sm:$0x1] %v15
  $region1: #{tpu_custom_call.1} parent=0
    #allocation3 [shape = 'u8[8192]{0}', space=vmem, size = 0x2000, scoped, tag = 'input window, operand 1, single buffered']
    #allocation4 [shape = 's32[1]{0}', space=sflag, size = 0x4, scoped, tag = 'scoped memory for tpu_custom_call.1']
    #allocation5 [shape = 's32[1]{0}', space=sflag, size = 0x4, scoped, tag = 'scoped memory for tpu_custom_call.1']
    #allocation6 [shape = 'u8[1024]{0}', space=vmem, size = 0x400, scoped, tag = 'output window, operand 0, single buffered']
    %17 = vsyncpa [#allocation4], 0
    %18 = vsyncpa [#allocation5], 0
    // Predicated region
    $region2: #{tpu_custom_call.1} parent=1 // pred_check
      _
    $region3: #{tpu_custom_call.1} parent=1 // pred_check_branch
      %20 = sbr.rel (0) target = $region5
    $region4: #{tpu_custom_call.1} parent=1 // pred_region
      _
    $region5: #{tpu_custom_call.1} parent=1 // pred_fallthru
      _
    // Predicated region
    $region6: #{tpu_custom_call.1} parent=1 // pred_check
      _
    $region7: #{tpu_custom_call.1} parent=1 // pred_check_branch
      %22 = sbr.rel (0) target = $region9
    $region8: #{tpu_custom_call.1} parent=1 // pred_region
      %s24 = ssub.s32 256, 256
      %25 = vsyncadd [#allocation4], %s24
      %s26 = sshll.u32 [#allocation3], 4
      %s27 = int_to_ptr.vmem [resolvable:$true] %s26
      %32 = dma.hbm_to_vmem [thread:$0]  %s1, 256, %s27, [#allocation4], 64, 64, 4
    $region9: #{tpu_custom_call.1} parent=1 // pred_fallthru
      _
    // Predicated region
    $region10: #{tpu_custom_call.1} parent=1 // pred_check
      _
    $region11: #{tpu_custom_call.1} parent=1 // pred_check_branch
      %34 = sbr.rel (0) target = $region13
    $region12: #{tpu_custom_call.1} parent=1 // pred_region
      _
    $region13: #{tpu_custom_call.1} parent=1 // pred_fallthru
      _
    // Predicated region
    $region14: #{tpu_custom_call.1} parent=1 // pred_check
      _
    $region15: #{tpu_custom_call.1} parent=1 // pred_check_branch
      %36 = sbr.rel (0) target = $region17
    $region16: #{tpu_custom_call.1} parent=1 // pred_region
      _
    $region17: #{tpu_custom_call.1} parent=1 // pred_fallthru
      _
    // Predicated region
    $region18: #{tpu_custom_call.1} parent=1 // pred_check
      _
    $region19: #{tpu_custom_call.1} parent=1 // pred_check_branch
      %38 = sbr.rel (0) target = $region21
    $region20: #{tpu_custom_call.1} parent=1 // pred_region
      _
    $region21: #{tpu_custom_call.1} parent=1 // pred_fallthru
      _
    // Predicated region
    $region22: #{tpu_custom_call.1} parent=1 // pred_check
      _
    $region23: #{tpu_custom_call.1} parent=1 // pred_check_branch
      %40 = sbr.rel (0) target = $region25
    $region24: #{tpu_custom_call.1} parent=1 // pred_region
      _
    $region25: #{tpu_custom_call.1} parent=1 // pred_fallthru
      _
    // Predicated region
    $region26: #{tpu_custom_call.1} parent=1 // pred_check
      _
    $region27: #{tpu_custom_call.1} parent=1 // pred_check_branch
      %42 = sbr.rel (0) target = $region29
    $region28: #{tpu_custom_call.1} parent=1 // pred_region
      _
    $region29: #{tpu_custom_call.1} parent=1 // pred_fallthru
      _
    // Predicated region
    $region30: #{tpu_custom_call.1} parent=1 // pred_check
      _
    $region31: #{tpu_custom_call.1} parent=1 // pred_check_branch
      %44 = sbr.rel (0) target = $region33
    $region32: #{tpu_custom_call.1} parent=1 // pred_region
      _
    $region33: #{tpu_custom_call.1} parent=1 // pred_fallthru
      _
    // Predicated region
    $region34: #{tpu_custom_call.1} parent=1 // pred_check
      _
    $region35: #{tpu_custom_call.1} parent=1 // pred_check_branch
      %46 = sbr.rel (0) target = $region37
    $region36: #{tpu_custom_call.1} parent=1 // pred_region
      _
    $region37: #{tpu_custom_call.1} parent=1 // pred_fallthru
      _
    // Predicated region
    $region38: #{tpu_custom_call.1} parent=1 // pred_check
      _
    $region39: #{tpu_custom_call.1} parent=1 // pred_check_branch
      %48 = sbr.rel (0) target = $region41
    $region40: #{tpu_custom_call.1} parent=1 // pred_region
      _
    $region41: #{tpu_custom_call.1} parent=1 // pred_fallthru
      _
    // Predicated region
    $region42: #{tpu_custom_call.1} parent=1 // pred_check
      _
    $region43: #{tpu_custom_call.1} parent=1 // pred_check_branch
      %50 = sbr.rel (0) target = $region45
    $region44: #{tpu_custom_call.1} parent=1 // pred_region
      %51 = dma.done [#allocation4], 256
    $region45: #{tpu_custom_call.1} parent=1 // pred_fallthru
      _
    %v53 = vld [vmem:[%s0] sm:$0xf]
    %v54 = vld [vmem:[%s0 + $0x4] sm:$0xf]
    %v55 = vld [vmem:[%s0 + $0x8] sm:$0xf]
    %v56 = vld [vmem:[%s0 + $0xc] sm:$0xf]
    %v57 = vld [vmem:[%s2] sm:$0xf]
    %v58 = vld [vmem:[%s3] sm:$0x1]
    %v60 = vlaneseq
    %v61 = vshrl.u32 %v60, 7
    %v62 = vsub.s32 0, %v61
    %v63 = vrot.slane %v58, %v62
    %v69 = vunpack.c.l.b16 %v53
    %v70 = vunpack.c.l.b16 %v54
    %v71 = vunpack.c.l.b16 %v55
    %v72 = vunpack.c.l.b16 %v56
    %v73 = vpack.c.b16 %v70, %v69
    %v74 = vpack.c.b16 %v72, %v71
    %vm75 = vcmask 64512
    %v77 = vsel %vm75, %v73, 0
    %v80 = vsel %vm75, %v74, 0
    %vm82 = vcmask 1043456
    %v84 = vsel %vm82, %v57, 0
    %86 = vmatprep.subr.bf16.mxu0 0
    %87 = vmatpush1.bf16.msra.mxu0 %v84
    %88 = vmatprep.subr.bf16.mxu0 0
    %89 = vmatpush1.bf16.msra.mxu0 0
    %90 = vmatprep.subr.bf16.mxu0 0
    %91 = vmatpush1.bf16.msra.mxu0 0
    %92 = vmatprep.subr.bf16.mxu0 0
    %93 = vmatpush1.bf16.msra.mxu0 0
    %94 = vmatprep.subr.bf16.mxu0 0
    %95 = vmatpush1.bf16.msra.mxu0 0
    %96 = vmatprep.subr.bf16.mxu0 0
    %97 = vmatpush1.bf16.msra.mxu0 0
    %98 = vmatprep.subr.bf16.mxu0 0
    %99 = vmatpush1.bf16.msra.mxu0 0
    %100 = vmatprep.subr.bf16.mxu0 0
    %101 = vmatpush1.bf16.msra.mxu0 0
    %102 = vmatprep.subr.bf16.mxu0 0
    %103 = vmatpush1.bf16.msra.mxu0 0
    %104 = vmatprep.subr.bf16.mxu0 0
    %105 = vmatpush1.bf16.msra.mxu0 0
    %106 = vmatprep.subr.bf16.mxu0 0
    %107 = vmatpush1.bf16.msra.mxu0 0
    %108 = vmatprep.subr.bf16.mxu0 0
    %109 = vmatpush1.bf16.msra.mxu0 0
    %110 = vmatprep.subr.bf16.mxu0 0
    %111 = vmatpush1.bf16.msra.mxu0 0
    %112 = vmatprep.subr.bf16.mxu0 0
    %113 = vmatpush1.bf16.msra.mxu0 0
    %114 = vmatprep.subr.bf16.mxu0 0
    %115 = vmatpush1.bf16.msra.mxu0 0
    %116 = vmatprep.subr.bf16.mxu0 0
    %117 = vmatpush1.bf16.msra.mxu0 0
    %118 = vmatprep.mubr.bf16.mxu0 0
    %119 = vmatmul.mubr.bf16.gmra.mrb[0].mxu0 %v77
    %v120 = vpop.f32.mrb[0].mxu0
    %v121 = vadd.f32 %v63, %v120
    %v122 = vpop.f32.mrb[0].mxu0
    %v123 = vpop.f32.mrb[0].mxu0
    %v124 = vadd.f32 %v63, %v123
    %v125 = vpop.f32.mrb[0].mxu0
    %126 = vmatprep.mubr.bf16.mxu0 0
    %127 = vmatmul.mubr.bf16.gmra.mrb[0].mxu0 %v80
    %v128 = vpop.f32.mrb[0].mxu0
    %v129 = vadd.f32 %v63, %v128
    %v130 = vpop.f32.mrb[0].mxu0
    %v131 = vpop.f32.mrb[0].mxu0
    %v132 = vadd.f32 %v63, %v131
    %v133 = vpop.f32.mrb[0].mxu0
    %134 = vdwg.mxu0
    %v135 = vld [vmem:[#allocation3] sm:$0xf]
    %v136 = vld [vmem:[#allocation3 + $0x4] sm:$0xf]
    %v137 = vld [vmem:[#allocation3 + $0x8] sm:$0xf]
    %v138 = vld [vmem:[#allocation3 + $0xc] sm:$0xf]
    %vm139 = vcmask 261120
    %v140 = vsel %vm139, %v121, 0.0
    %141 = vadd.xlane.f32.xlu0 %v140
    %v142 = vpop.xlane.xlu0 %141
    %v143 = vsel %vm139, %v124, 0.0
    %144 = vadd.xlane.f32.xlu0 %v143
    %v145 = vpop.xlane.xlu0 %144
    %v146 = vsel %vm139, %v129, 0.0
    %147 = vadd.xlane.f32.xlu0 %v146
    %v148 = vpop.xlane.xlu0 %147
    %v149 = vsel %vm139, %v132, 0.0
    %150 = vadd.xlane.f32.xlu0 %v149
    %v151 = vpop.xlane.xlu0 %150
    %v152 = vmul.f32 %v121, %v121
    %v153 = vmul.f32 %v124, %v124
    %v154 = vmul.f32 %v129, %v129
    %v155 = vmul.f32 %v132, %v132
    %v156 = vsel %vm139, %v152, 0.0
    %157 = vadd.xlane.f32.xlu0 %v156
    %v158 = vpop.xlane.xlu0 %157
    %v159 = vsel %vm139, %v153, 0.0
    %160 = vadd.xlane.f32.xlu0 %v159
    %v161 = vpop.xlane.xlu0 %160
    %v162 = vsel %vm139, %v154, 0.0
    %163 = vadd.xlane.f32.xlu0 %v162
    %v164 = vpop.xlane.xlu0 %163
    %v165 = vsel %vm139, %v155, 0.0
    %166 = vadd.xlane.f32.xlu0 %v165
    %v167 = vpop.xlane.xlu0 %166
    %v168 = vmul.f32 %v142, 0.03125
    %v169 = vmul.f32 %v145, 0.03125
    %v170 = vmul.f32 %v148, 0.03125
    %v171 = vmul.f32 %v151, 0.03125
    %v172 = vmul.f32 %v158, 0.03125
    %v173 = vmul.f32 %v161, 0.03125
    %v174 = vmul.f32 %v164, 0.03125
    %v175 = vmul.f32 %v167, 0.03125
    %v176 = vmul.f32 %v168, %v168
    %v177 = vmul.f32 %v169, %v169
    %v178 = vmul.f32 %v170, %v170
    %v179 = vmul.f32 %v171, %v171
    %v180 = vsub.f32 %v172, %v176
    %v181 = vsub.f32 %v173, %v177
    %v182 = vsub.f32 %v174, %v178
    %v183 = vsub.f32 %v175, %v179
    %v184 = vmax.f32 %v180, 0.0
    %v185 = vmax.f32 %v181, 0.0
    %v186 = vmax.f32 %v182, 0.0
    %v187 = vmax.f32 %v183, 0.0
    %v188 = vsub.f32 %v121, %v168
    %v189 = vsub.f32 %v124, %v169
    %v190 = vsub.f32 %v129, %v170
    %v191 = vsub.f32 %v132, %v171
    %v192 = vadd.f32 %v184, 1e-05
    %v193 = vadd.f32 %v185, 1e-05
    %v194 = vadd.f32 %v186, 1e-05
    %v195 = vadd.f32 %v187, 1e-05
    %v196 = vrsqrt.pop %v192
    %v197 = vrsqrt.pop %v193
    %v198 = vrsqrt.pop %v194
    %v199 = vrsqrt.pop %v195
    %v200 = vmul.f32 %v188, %v196
    %v201 = vmul.f32 %v189, %v197
    %v202 = vmul.f32 %v190, %v198
    %v203 = vmul.f32 %v191, %v199
    %v204 = vld [vmem:[%s4] sm:$0x1]
    %v206 = vlaneseq
    %v207 = vshrl.u32 %v206, 7
    %v208 = vsub.s32 0, %v207
    %v209 = vrot.slane %v204, %v208
    %v211 = vmul.f32 %v200, %v209
    %v212 = vmul.f32 %v201, %v209
    %v213 = vmul.f32 %v202, %v209
    %v214 = vmul.f32 %v203, %v209
    %v215 = vld [vmem:[%s5] sm:$0x1]
    %v217 = vlaneseq
    %v218 = vshrl.u32 %v217, 7
    %v219 = vsub.s32 0, %v218
    %v220 = vrot.slane %v215, %v219
    %v222 = vadd.f32 %v211, %v220
    %v223 = vadd.f32 %v212, %v220
    %v224 = vadd.f32 %v213, %v220
    %v225 = vadd.f32 %v214, %v220
    %v226 = vmax.f32 %v222, 0.0
    %v227 = vmax.f32 %v223, 0.0
    %v228 = vmax.f32 %v224, 0.0
    %v229 = vmax.f32 %v225, 0.0
    %v230 = vpack.c.bf16 %v227, %v226
    %v231 = vpack.c.bf16 %v229, %v228
    %v232 = vld [vmem:[%s6] sm:$0xf]
    %v233 = vld [vmem:[%s6 + $0x4] sm:$0xf]
    %v234 = vld [vmem:[%s6 + $0x8] sm:$0xf]
    %v235 = vld [vmem:[%s6 + $0xc] sm:$0xf]
    %v240 = vunpack.c.l.b16 %v232
    %v241 = vunpack.c.l.b16 %v233
    %v242 = vunpack.c.l.b16 %v234
    %v243 = vunpack.c.l.b16 %v235
    %v244 = vpack.c.b16 %v241, %v240
    %v245 = vpack.c.b16 %v243, %v242
    %v249 = vsel %vm139, %v230, 0
    %v252 = vsel %vm139, %v231, 0
    %254 = vmatprep.subr.bf16.mxu0 0
    %255 = vmatpush1.bf16.msra.mxu0 %v244
    %256 = vmatprep.subr.bf16.mxu0 0
    %257 = vmatpush1.bf16.msra.mxu0 %v245
    %258 = vmatprep.subr.bf16.mxu0 0
    %259 = vmatpush1.bf16.msra.mxu0 0
    %260 = vmatprep.subr.bf16.mxu0 0
    %261 = vmatpush1.bf16.msra.mxu0 0
    %262 = vmatprep.subr.bf16.mxu0 0
    %263 = vmatpush1.bf16.msra.mxu0 0
    %264 = vmatprep.subr.bf16.mxu0 0
    %265 = vmatpush1.bf16.msra.mxu0 0
    %266 = vmatprep.subr.bf16.mxu0 0
    %267 = vmatpush1.bf16.msra.mxu0 0
    %268 = vmatprep.subr.bf16.mxu0 0
    %269 = vmatpush1.bf16.msra.mxu0 0
    %270 = vmatprep.subr.bf16.mxu0 0
    %271 = vmatpush1.bf16.msra.mxu0 0
    %272 = vmatprep.subr.bf16.mxu0 0
    %273 = vmatpush1.bf16.msra.mxu0 0
    %274 = vmatprep.subr.bf16.mxu0 0
    %275 = vmatpush1.bf16.msra.mxu0 0
    %276 = vmatprep.subr.bf16.mxu0 0
    %277 = vmatpush1.bf16.msra.mxu0 0
    %278 = vmatprep.subr.bf16.mxu0 0
    %279 = vmatpush1.bf16.msra.mxu0 0
    %280 = vmatprep.subr.bf16.mxu0 0
    %281 = vmatpush1.bf16.msra.mxu0 0
    %282 = vmatprep.subr.bf16.mxu0 0
    %283 = vmatpush1.bf16.msra.mxu0 0
    %284 = vmatprep.subr.bf16.mxu0 0
    %285 = vmatpush1.bf16.msra.mxu0 0
    %286 = vmatprep.mubr.bf16.mxu0 0
    %287 = vmatmul.mubr.bf16.gmra.mrb[0].mxu0 %v249
    %v288 = vpop.f32.mrb[0].mxu0
    %v289 = vadd.f32 0.0, %v288
    %v290 = vpop.f32.mrb[0].mxu0
    %v291 = vpop.f32.mrb[0].mxu0
    %v292 = vadd.f32 0.0, %v291
    %v293 = vpop.f32.mrb[0].mxu0
    %294 = vmatprep.mubr.bf16.mxu0 0
    %295 = vmatmul.mubr.bf16.gmra.mrb[0].mxu0 %v252
    %v296 = vpop.f32.mrb[0].mxu0
    %v297 = vadd.f32 0.0, %v296
    %v298 = vpop.f32.mrb[0].mxu0
    %v299 = vpop.f32.mrb[0].mxu0
    %v300 = vadd.f32 0.0, %v299
    %v301 = vpop.f32.mrb[0].mxu0
    %302 = vdwg.mxu0
    %v303 = vpack.c.bf16 %v292, %v289
    %v304 = vpack.c.bf16 %v300, %v297
    %v307 = vunpack.c.l.b16 %v135
    %v308 = vunpack.c.l.b16 %v136
    %v309 = vpack.c.b16 %v308, %v307
    %vm310 = vcmask 130048
    %v312 = vsel %vm310, %v309, 0
    %314 = vmatprep.subr.bf16.mxu0 0
    %315 = vmatpush1.bf16.msra.mxu0 %v303
    %316 = vmatprep.subr.bf16.mxu0 0
    %317 = vmatpush1.bf16.msra.mxu0 0
    %318 = vmatprep.subr.bf16.mxu0 0
    %319 = vmatpush1.bf16.msra.mxu0 0
    %320 = vmatprep.subr.bf16.mxu0 0
    %321 = vmatpush1.bf16.msra.mxu0 0
    %322 = vmatprep.subr.bf16.mxu0 0
    %323 = vmatpush1.bf16.msra.mxu0 0
    %324 = vmatprep.subr.bf16.mxu0 0
    %325 = vmatpush1.bf16.msra.mxu0 0
    %326 = vmatprep.subr.bf16.mxu0 0
    %327 = vmatpush1.bf16.msra.mxu0 0
    %328 = vmatprep.subr.bf16.mxu0 0
    %329 = vmatpush1.bf16.msra.mxu0 0
    %330 = vmatprep.subr.bf16.mxu0 0
    %331 = vmatpush1.bf16.msra.mxu0 0
    %332 = vmatprep.subr.bf16.mxu0 0
    %333 = vmatpush1.bf16.msra.mxu0 0
    %334 = vmatprep.subr.bf16.mxu0 0
    %335 = vmatpush1.bf16.msra.mxu0 0
    %336 = vmatprep.subr.bf16.mxu0 0
    %337 = vmatpush1.bf16.msra.mxu0 0
    %338 = vmatprep.subr.bf16.mxu0 0
    %339 = vmatpush1.bf16.msra.mxu0 0
    %340 = vmatprep.subr.bf16.mxu0 0
    %341 = vmatpush1.bf16.msra.mxu0 0
    %342 = vmatprep.subr.bf16.mxu0 0
    %343 = vmatpush1.bf16.msra.mxu0 0
    %344 = vmatprep.subr.bf16.mxu0 0
    %345 = vmatpush1.bf16.msra.mxu0 0
    %346 = vmatprep.mubr.bf16.mxu0 0
    %347 = vmatmul.mubr.bf16.gmra.mrb[0].mxu0 %v312
    %v348 = vpop.f32.mrb[0].mxu0
    %v349 = vadd.f32 0.0, %v348
    %v350 = vpop.f32.mrb[0].mxu0
    %v351 = vpop.f32.mrb[0].mxu0
    %v352 = vadd.f32 0.0, %v351
    %v353 = vpop.f32.mrb[0].mxu0
    %354 = vdwg.mxu0
    %v357 = vunpack.c.l.b16 %v137
    %v358 = vunpack.c.l.b16 %v138
    %v359 = vpack.c.b16 %v358, %v357
    %v361 = vsel %vm310, %v359, 0
    %363 = vmatprep.subr.bf16.mxu0 0
    %364 = vmatpush1.bf16.msra.mxu0 %v304
    %365 = vmatprep.subr.bf16.mxu0 0
    %366 = vmatpush1.bf16.msra.mxu0 0
    %367 = vmatprep.subr.bf16.mxu0 0
    %368 = vmatpush1.bf16.msra.mxu0 0
    %369 = vmatprep.subr.bf16.mxu0 0
    %370 = vmatpush1.bf16.msra.mxu0 0
    %371 = vmatprep.subr.bf16.mxu0 0
    %372 = vmatpush1.bf16.msra.mxu0 0
    %373 = vmatprep.subr.bf16.mxu0 0
    %374 = vmatpush1.bf16.msra.mxu0 0
    %375 = vmatprep.subr.bf16.mxu0 0
    %376 = vmatpush1.bf16.msra.mxu0 0
    %377 = vmatprep.subr.bf16.mxu0 0
    %378 = vmatpush1.bf16.msra.mxu0 0
    %379 = vmatprep.subr.bf16.mxu0 0
    %380 = vmatpush1.bf16.msra.mxu0 0
    %381 = vmatprep.subr.bf16.mxu0 0
    %382 = vmatpush1.bf16.msra.mxu0 0
    %383 = vmatprep.subr.bf16.mxu0 0
    %384 = vmatpush1.bf16.msra.mxu0 0
    %385 = vmatprep.subr.bf16.mxu0 0
    %386 = vmatpush1.bf16.msra.mxu0 0
    %387 = vmatprep.subr.bf16.mxu0 0
    %388 = vmatpush1.bf16.msra.mxu0 0
    %389 = vmatprep.subr.bf16.mxu0 0
    %390 = vmatpush1.bf16.msra.mxu0 0
    %391 = vmatprep.subr.bf16.mxu0 0
    %392 = vmatpush1.bf16.msra.mxu0 0
    %393 = vmatprep.subr.bf16.mxu0 0
    %394 = vmatpush1.bf16.msra.mxu0 0
    %395 = vmatprep.mubr.bf16.mxu0 0
    %396 = vmatmul.mubr.bf16.gmra.mrb[0].mxu0 %v361
    %v397 = vpop.f32.mrb[0].mxu0
    %v398 = vadd.f32 0.0, %v397
    %v399 = vpop.f32.mrb[0].mxu0
    %v400 = vpop.f32.mrb[0].mxu0
    %v401 = vadd.f32 0.0, %v400
    %v402 = vpop.f32.mrb[0].mxu0
    %403 = vdwg.mxu0
    %v404 = vadd.f32 %v121, %v349
    %v405 = vadd.f32 %v124, %v352
    %v406 = vadd.f32 %v129, %v398
    %v407 = vadd.f32 %v132, %v401
    %v408 = vld [vmem:[%s7] sm:$0x1]
    %v410 = vlaneseq
    %v411 = vshrl.u32 %v410, 7
    %v412 = vsub.s32 0, %v411
    %v413 = vrot.slane %v408, %v412
    %v415 = vadd.f32 %v404, %v413
    %v416 = vadd.f32 %v405, %v413
    %v417 = vadd.f32 %v406, %v413
    %v418 = vadd.f32 %v407, %v413
    %v419 = vsel %vm139, %v415, 0.0
    %420 = vadd.xlane.f32.xlu0 %v419
    %v421 = vpop.xlane.xlu0 %420
    %v422 = vsel %vm139, %v416, 0.0
    %423 = vadd.xlane.f32.xlu0 %v422
    %v424 = vpop.xlane.xlu0 %423
    %v425 = vsel %vm139, %v417, 0.0
    %426 = vadd.xlane.f32.xlu0 %v425
    %v427 = vpop.xlane.xlu0 %426
    %v428 = vsel %vm139, %v418, 0.0
    %429 = vadd.xlane.f32.xlu0 %v428
    %v430 = vpop.xlane.xlu0 %429
    %v431 = vmul.f32 %v415, %v415
    %v432 = vmul.f32 %v416, %v416
    %v433 = vmul.f32 %v417, %v417
    %v434 = vmul.f32 %v418, %v418
    %v435 = vsel %vm139, %v431, 0.0
    %436 = vadd.xlane.f32.xlu0 %v435
    %v437 = vpop.xlane.xlu0 %436
    %v438 = vsel %vm139, %v432, 0.0
    %439 = vadd.xlane.f32.xlu0 %v438
    %v440 = vpop.xlane.xlu0 %439
    %v441 = vsel %vm139, %v433, 0.0
    %442 = vadd.xlane.f32.xlu0 %v441
    %v443 = vpop.xlane.xlu0 %442
    %v444 = vsel %vm139, %v434, 0.0
    %445 = vadd.xlane.f32.xlu0 %v444
    %v446 = vpop.xlane.xlu0 %445
    %v447 = vmul.f32 %v421, 0.03125
    %v448 = vmul.f32 %v424, 0.03125
    %v449 = vmul.f32 %v427, 0.03125
    %v450 = vmul.f32 %v430, 0.03125
    %v451 = vmul.f32 %v437, 0.03125
    %v452 = vmul.f32 %v440, 0.03125
    %v453 = vmul.f32 %v443, 0.03125
    %v454 = vmul.f32 %v446, 0.03125
    %v455 = vmul.f32 %v447, %v447
    %v456 = vmul.f32 %v448, %v448
    %v457 = vmul.f32 %v449, %v449
    %v458 = vmul.f32 %v450, %v450
    %v459 = vsub.f32 %v451, %v455
    %v460 = vsub.f32 %v452, %v456
    %v461 = vsub.f32 %v453, %v457
    %v462 = vsub.f32 %v454, %v458
    %v463 = vmax.f32 %v459, 0.0
    %v464 = vmax.f32 %v460, 0.0
    %v465 = vmax.f32 %v461, 0.0
    %v466 = vmax.f32 %v462, 0.0
    %v467 = vsub.f32 %v415, %v447
    %v468 = vsub.f32 %v416, %v448
    %v469 = vsub.f32 %v417, %v449
    %v470 = vsub.f32 %v418, %v450
    %v471 = vadd.f32 %v463, 1e-05
    %v472 = vadd.f32 %v464, 1e-05
    %v473 = vadd.f32 %v465, 1e-05
    %v474 = vadd.f32 %v466, 1e-05
    %v475 = vrsqrt.pop %v471
    %v476 = vrsqrt.pop %v472
    %v477 = vrsqrt.pop %v473
    %v478 = vrsqrt.pop %v474
    %v479 = vmul.f32 %v467, %v475
    %v480 = vmul.f32 %v468, %v476
    %v481 = vmul.f32 %v469, %v477
    %v482 = vmul.f32 %v470, %v478
    %s483 = scalar_lea.vmem %s4, 1
    %v484 = vld [vmem:[%s483] sm:$0x1]
    %v486 = vlaneseq
    %v487 = vshrl.u32 %v486, 7
    %v488 = vsub.s32 0, %v487
    %v489 = vrot.slane %v484, %v488
    %v491 = vmul.f32 %v479, %v489
    %v492 = vmul.f32 %v480, %v489
    %v493 = vmul.f32 %v481, %v489
    %v494 = vmul.f32 %v482, %v489
    %s495 = scalar_lea.vmem %s5, 1
    %v496 = vld [vmem:[%s495] sm:$0x1]
    %v498 = vlaneseq
    %v499 = vshrl.u32 %v498, 7
    %v500 = vsub.s32 0, %v499
    %v501 = vrot.slane %v496, %v500
    %v503 = vadd.f32 %v491, %v501
    %v504 = vadd.f32 %v492, %v501
    %v505 = vadd.f32 %v493, %v501
    %v506 = vadd.f32 %v494, %v501
    %v507 = vmax.f32 %v503, 0.0
    %v508 = vmax.f32 %v504, 0.0
    %v509 = vmax.f32 %v505, 0.0
    %v510 = vmax.f32 %v506, 0.0
    %v511 = vpack.c.bf16 %v508, %v507
    %v512 = vpack.c.bf16 %v510, %v509
    %s513 = scalar_lea.vmem %s6, 16
    %v514 = vld [vmem:[%s513] sm:$0xf]
    %v515 = vld [vmem:[%s513 + $0x4] sm:$0xf]
    %v516 = vld [vmem:[%s513 + $0x8] sm:$0xf]
    %v517 = vld [vmem:[%s513 + $0xc] sm:$0xf]
    %v522 = vunpack.c.l.b16 %v514
    %v523 = vunpack.c.l.b16 %v515
    %v524 = vunpack.c.l.b16 %v516
    %v525 = vunpack.c.l.b16 %v517
    %v526 = vpack.c.b16 %v523, %v522
    %v527 = vpack.c.b16 %v525, %v524
    %v531 = vsel %vm139, %v511, 0
    %v534 = vsel %vm139, %v512, 0
    %536 = vmatprep.subr.bf16.mxu0 0
    %537 = vmatpush1.bf16.msra.mxu0 %v526
    %538 = vmatprep.subr.bf16.mxu0 0
    %539 = vmatpush1.bf16.msra.mxu0 %v527
    %540 = vmatprep.subr.bf16.mxu0 0
    %541 = vmatpush1.bf16.msra.mxu0 0
    %542 = vmatprep.subr.bf16.mxu0 0
    %543 = vmatpush1.bf16.msra.mxu0 0
    %544 = vmatprep.subr.bf16.mxu0 0
    %545 = vmatpush1.bf16.msra.mxu0 0
    %546 = vmatprep.subr.bf16.mxu0 0
    %547 = vmatpush1.bf16.msra.mxu0 0
    %548 = vmatprep.subr.bf16.mxu0 0
    %549 = vmatpush1.bf16.msra.mxu0 0
    %550 = vmatprep.subr.bf16.mxu0 0
    %551 = vmatpush1.bf16.msra.mxu0 0
    %552 = vmatprep.subr.bf16.mxu0 0
    %553 = vmatpush1.bf16.msra.mxu0 0
    %554 = vmatprep.subr.bf16.mxu0 0
    %555 = vmatpush1.bf16.msra.mxu0 0
    %556 = vmatprep.subr.bf16.mxu0 0
    %557 = vmatpush1.bf16.msra.mxu0 0
    %558 = vmatprep.subr.bf16.mxu0 0
    %559 = vmatpush1.bf16.msra.mxu0 0
    %560 = vmatprep.subr.bf16.mxu0 0
    %561 = vmatpush1.bf16.msra.mxu0 0
    %562 = vmatprep.subr.bf16.mxu0 0
    %563 = vmatpush1.bf16.msra.mxu0 0
    %564 = vmatprep.subr.bf16.mxu0 0
    %565 = vmatpush1.bf16.msra.mxu0 0
    %566 = vmatprep.subr.bf16.mxu0 0
    %567 = vmatpush1.bf16.msra.mxu0 0
    %568 = vmatprep.mubr.bf16.mxu0 0
    %569 = vmatmul.mubr.bf16.gmra.mrb[0].mxu0 %v531
    %v570 = vpop.f32.mrb[0].mxu0
    %v571 = vadd.f32 0.0, %v570
    %v572 = vpop.f32.mrb[0].mxu0
    %v573 = vpop.f32.mrb[0].mxu0
    %v574 = vadd.f32 0.0, %v573
    %v575 = vpop.f32.mrb[0].mxu0
    %576 = vmatprep.mubr.bf16.mxu0 0
    %577 = vmatmul.mubr.bf16.gmra.mrb[0].mxu0 %v534
    %v578 = vpop.f32.mrb[0].mxu0
    %v579 = vadd.f32 0.0, %v578
    %v580 = vpop.f32.mrb[0].mxu0
    %v581 = vpop.f32.mrb[0].mxu0
    %v582 = vadd.f32 0.0, %v581
    %v583 = vpop.f32.mrb[0].mxu0
    %584 = vdwg.mxu0
    %v585 = vpack.c.bf16 %v574, %v571
    %v586 = vpack.c.bf16 %v582, %v579
    %587 = vmatprep.subr.bf16.mxu0 0
    %588 = vmatpush1.bf16.msra.mxu0 %v585
    %589 = vmatprep.subr.bf16.mxu0 0
    %590 = vmatpush1.bf16.msra.mxu0 0
    %591 = vmatprep.subr.bf16.mxu0 0
    %592 = vmatpush1.bf16.msra.mxu0 0
    %593 = vmatprep.subr.bf16.mxu0 0
    %594 = vmatpush1.bf16.msra.mxu0 0
    %595 = vmatprep.subr.bf16.mxu0 0
    %596 = vmatpush1.bf16.msra.mxu0 0
    %597 = vmatprep.subr.bf16.mxu0 0
    %598 = vmatpush1.bf16.msra.mxu0 0
    %599 = vmatprep.subr.bf16.mxu0 0
    %600 = vmatpush1.bf16.msra.mxu0 0
    %601 = vmatprep.subr.bf16.mxu0 0
    %602 = vmatpush1.bf16.msra.mxu0 0
    %603 = vmatprep.subr.bf16.mxu0 0
    %604 = vmatpush1.bf16.msra.mxu0 0
    %605 = vmatprep.subr.bf16.mxu0 0
    %606 = vmatpush1.bf16.msra.mxu0 0
    %607 = vmatprep.subr.bf16.mxu0 0
    %608 = vmatpush1.bf16.msra.mxu0 0
    %609 = vmatprep.subr.bf16.mxu0 0
    %610 = vmatpush1.bf16.msra.mxu0 0
    %611 = vmatprep.subr.bf16.mxu0 0
    %612 = vmatpush1.bf16.msra.mxu0 0
    %613 = vmatprep.subr.bf16.mxu0 0
    %614 = vmatpush1.bf16.msra.mxu0 0
    %615 = vmatprep.subr.bf16.mxu0 0
    %616 = vmatpush1.bf16.msra.mxu0 0
    %617 = vmatprep.subr.bf16.mxu0 0
    %618 = vmatpush1.bf16.msra.mxu0 0
    %619 = vmatprep.mubr.bf16.mxu0 0
    %620 = vmatmul.mubr.bf16.gmra.mrb[0].mxu0 %v312
    %v621 = vpop.f32.mrb[0].mxu0
    %v622 = vadd.f32 0.0, %v621
    %v623 = vpop.f32.mrb[0].mxu0
    %v624 = vpop.f32.mrb[0].mxu0
    %v625 = vadd.f32 0.0, %v624
    %v626 = vpop.f32.mrb[0].mxu0
    %627 = vdwg.mxu0
    %628 = vmatprep.subr.bf16.mxu0 0
    %629 = vmatpush1.bf16.msra.mxu0 %v586
    %630 = vmatprep.subr.bf16.mxu0 0
    %631 = vmatpush1.bf16.msra.mxu0 0
    %632 = vmatprep.subr.bf16.mxu0 0
    %633 = vmatpush1.bf16.msra.mxu0 0
    %634 = vmatprep.subr.bf16.mxu0 0
    %635 = vmatpush1.bf16.msra.mxu0 0
    %636 = vmatprep.subr.bf16.mxu0 0
    %637 = vmatpush1.bf16.msra.mxu0 0
    %638 = vmatprep.subr.bf16.mxu0 0
    %639 = vmatpush1.bf16.msra.mxu0 0
    %640 = vmatprep.subr.bf16.mxu0 0
    %641 = vmatpush1.bf16.msra.mxu0 0
    %642 = vmatprep.subr.bf16.mxu0 0
    %643 = vmatpush1.bf16.msra.mxu0 0
    %644 = vmatprep.subr.bf16.mxu0 0
    %645 = vmatpush1.bf16.msra.mxu0 0
    %646 = vmatprep.subr.bf16.mxu0 0
    %647 = vmatpush1.bf16.msra.mxu0 0
    %648 = vmatprep.subr.bf16.mxu0 0
    %649 = vmatpush1.bf16.msra.mxu0 0
    %650 = vmatprep.subr.bf16.mxu0 0
    %651 = vmatpush1.bf16.msra.mxu0 0
    %652 = vmatprep.subr.bf16.mxu0 0
    %653 = vmatpush1.bf16.msra.mxu0 0
    %654 = vmatprep.subr.bf16.mxu0 0
    %655 = vmatpush1.bf16.msra.mxu0 0
    %656 = vmatprep.subr.bf16.mxu0 0
    %657 = vmatpush1.bf16.msra.mxu0 0
    %658 = vmatprep.subr.bf16.mxu0 0
    %659 = vmatpush1.bf16.msra.mxu0 0
    %660 = vmatprep.mubr.bf16.mxu0 0
    %661 = vmatmul.mubr.bf16.gmra.mrb[0].mxu0 %v361
    %v662 = vpop.f32.mrb[0].mxu0
    %v663 = vadd.f32 0.0, %v662
    %v664 = vpop.f32.mrb[0].mxu0
    %v665 = vpop.f32.mrb[0].mxu0
    %v666 = vadd.f32 0.0, %v665
    %v667 = vpop.f32.mrb[0].mxu0
    %668 = vdwg.mxu0
    %v669 = vadd.f32 %v415, %v622
    %v670 = vadd.f32 %v416, %v625
    %v671 = vadd.f32 %v417, %v663
    %v672 = vadd.f32 %v418, %v666
    %s673 = scalar_lea.vmem %s7, 1
    %v674 = vld [vmem:[%s673] sm:$0x1]
    %v676 = vlaneseq
    %v677 = vshrl.u32 %v676, 7
    %v678 = vsub.s32 0, %v677
    %v679 = vrot.slane %v674, %v678
    %v681 = vadd.f32 %v669, %v679
    %v682 = vadd.f32 %v670, %v679
    %v683 = vadd.f32 %v671, %v679
    %v684 = vadd.f32 %v672, %v679
    %v685 = vld [vmem:[%s8] sm:$0x1]
    %v687 = vlaneseq
    %v688 = vshrl.u32 %v687, 7
    %v689 = vsub.s32 0, %v688
    %v690 = vrot.slane %v685, %v689
    %v692 = vmul.f32 %v681, %v690
    %v693 = vmul.f32 %v682, %v690
    %v694 = vmul.f32 %v683, %v690
    %v695 = vmul.f32 %v684, %v690
    %v696 = vsel %vm139, %v692, 0.0
    %697 = vadd.xlane.f32.xlu0 %v696
    %v698 = vpop.xlane.xlu0 %697
    %v699 = vsel %vm139, %v693, 0.0
    %700 = vadd.xlane.f32.xlu0 %v699
    %v701 = vpop.xlane.xlu0 %700
    %v702 = vsel %vm139, %v694, 0.0
    %703 = vadd.xlane.f32.xlu0 %v702
    %v704 = vpop.xlane.xlu0 %703
    %v705 = vsel %vm139, %v695, 0.0
    %706 = vadd.xlane.f32.xlu0 %v705
    %v707 = vpop.xlane.xlu0 %706
    %v708 = vld [vmem:[#allocation2] sm:$0x1]
    %s709 = vtos %v708
    %v710 = vstv %s709
    %v711 = vadd.f32 %v698, %v710
    %v712 = vadd.f32 %v701, %v710
    %v713 = vadd.f32 %v704, %v710
    %v714 = vadd.f32 %v707, %v710
    %v719 = vlaneseq
    %v720 = vand.u32 %v719, 127
    %v721 = vlaneseq
    %v722 = vshrl.u32 %v721, 7
    %v723 = vsub.s32 %v720, %v722
    %v724 = vrot.slane %v711, %v723
    %v725 = vadd.s32 %v720, 4294967288
    %v726 = vlaneseq
    %v727 = vshrl.u32 %v726, 7
    %v728 = vsub.s32 %v725, %v727
    %v729 = vrot.slane %v712, %v728
    %vm730 = vcmask 130112
    %v731 = vsel %vm730, %v729, %v724
    %v732 = vlaneseq
    %v733 = vshrl.u32 %v732, 7
    %v734 = vsub.s32 %v720, %v733
    %v735 = vrot.slane %v713, %v734
    %v736 = vlaneseq
    %v737 = vshrl.u32 %v736, 7
    %v738 = vsub.s32 %v725, %v737
    %v739 = vrot.slane %v714, %v738
    %v740 = vsel %vm730, %v739, %v735
    %vm741 = vcmask 1041409
    %v742 = vsel %vm741, %v740, %v731
    %vm744 = vcmask 123904
    %745 = vst.msk [vmem:[#allocation6] sm:$0x3] %vm744, %v742
    // Predicated region
    $region46: #{tpu_custom_call.1} parent=1 // pred_check
      _
    $region47: #{tpu_custom_call.1} parent=1 // pred_check_branch
      %747 = sbr.rel (0) target = $region49
    $region48: #{tpu_custom_call.1} parent=1 // pred_region
      %s749 = ssub.s32 32, 32
      %750 = vsyncadd [#allocation5], %s749
      %s752 = sshll.u32 [#allocation6], 4
      %s753 = int_to_ptr.vmem [resolvable:$true] %s752
      %755 = dma.vmem_to_hbm [thread:$0]  %s753, 32, %s10, [#allocation5]
    $region49: #{tpu_custom_call.1} parent=1 // pred_fallthru
      _
    // Predicated region
    $region50: #{tpu_custom_call.1} parent=1 // pred_check
      _
    $region51: #{tpu_custom_call.1} parent=1 // pred_check_branch
      %757 = sbr.rel (0) target = $region53
    $region52: #{tpu_custom_call.1} parent=1 // pred_region
      %758 = dma.done [#allocation5], 32
    $region53: #{tpu_custom_call.1} parent=1 // pred_fallthru
      _
    %759 = vsyncpa [#allocation4], 1
    %760 = vsyncpa [#allocation5], 1

// kernel: tpu_custom_call.1
$region0: #{tpu_custom_call.1}
  #allocation0 [shape = 'u32[]', space=smem, size = 0x4, offset = 0x4, fixed_abs, tag = 'smem constant byte address 0x4 - core index']
  #allocation1 [shape = 'u32[144,128]{1,0:T(1,128)}', space=vmem, size = 0x12000, scoped, tag = 'internal scratch']
  #allocation2 [shape = 'f32[1,1]{1,0:T(1,128)S(1)}', space=vmem, size = 0x200, scoped, tag = 'scoped memory for tpu_custom_call.1']
  %s0 = inlined_call_operand.vmem [shape: bf16[32,8], index: 0, kind: input, shape index: {}]
  %s1 = inlined_call_operand.hbm [shape: bf16[2,16,16], index: 1, kind: input, shape index: {}]
  %s2 = inlined_call_operand.vmem [shape: bf16[8,32], index: 2, kind: input, shape index: {}]
  %s3 = inlined_call_operand.vmem [shape: f32[1,32], index: 3, kind: input, shape index: {}]
  %s4 = inlined_call_operand.vmem [shape: f32[2,1,32], index: 4, kind: input, shape index: {}]
  %s5 = inlined_call_operand.vmem [shape: f32[2,1,32], index: 5, kind: input, shape index: {}]
  %s6 = inlined_call_operand.vmem [shape: bf16[2,32,32], index: 6, kind: input, shape index: {}]
  %s7 = inlined_call_operand.vmem [shape: f32[2,1,32], index: 7, kind: input, shape index: {}]
  %s8 = inlined_call_operand.vmem [shape: f32[1,32], index: 8, kind: input, shape index: {}]
  %s9 = inlined_call_operand.<no memory space> [shape: f32[1,1], index: 9, kind: input, shape index: {}]
  %s10 = inlined_call_operand.hbm [shape: f32[2,16], index: 10, kind: output, shape index: {}]
  %s11 = sld [smem:[#allocation0]]
  $region54: #{tpu_custom_call.1} parent=0
    _
  %s13 = ssub.s32 1, %s11
  %s14 = scalar_select 0, %s13, %s11
  %v15 = vstv %s9
  %16 = vst [vmem:[#allocation2] sm:$0x1] %v15
  $region1: #{tpu_custom_call.1} parent=0
    #allocation3 [shape = 'u8[8192]{0}', space=vmem, size = 0x2000, scoped, tag = 'input window, operand 1, single buffered']
    #allocation4 [shape = 's32[1]{0}', space=sflag, size = 0x4, scoped, tag = 'scoped memory for tpu_custom_call.1']
    #allocation5 [shape = 's32[1]{0}', space=sflag, size = 0x4, scoped, tag = 'scoped memory for tpu_custom_call.1']
    #allocation6 [shape = 'u8[1024]{0}', space=vmem, size = 0x400, scoped, tag = 'output window, operand 0, single buffered']
    %17 = vsyncpa [#allocation4], 0
    %18 = vsyncpa [#allocation5], 0
    // Predicated region
    $region2: #{tpu_custom_call.1} parent=1 // pred_check
      _
    $region3: #{tpu_custom_call.1} parent=1 // pred_check_branch
      %20 = sbr.rel (0) target = $region5
    $region4: #{tpu_custom_call.1} parent=1 // pred_region
      _
    $region5: #{tpu_custom_call.1} parent=1 // pred_fallthru
      _
    // Predicated region
    $region6: #{tpu_custom_call.1} parent=1 // pred_check
      _
    $region7: #{tpu_custom_call.1} parent=1 // pred_check_branch
      %22 = sbr.rel (0) target = $region9
    $region8: #{tpu_custom_call.1} parent=1 // pred_region
      %s24 = ssub.s32 256, 256
      %25 = vsyncadd [#allocation4], %s24
      %s26 = sshll.u32 [#allocation3], 4
      %s27 = int_to_ptr.vmem [resolvable:$true] %s26
      %32 = dma.hbm_to_vmem [thread:$0]  %s1, 256, %s27, [#allocation4], 64, 64, 4
    $region9: #{tpu_custom_call.1} parent=1 // pred_fallthru
      _
    // Predicated region
    $region10: #{tpu_custom_call.1} parent=1 // pred_check
      _
    $region11: #{tpu_custom_call.1} parent=1 // pred_check_branch
      %34 = sbr.rel (0) target = $region13
    $region12: #{tpu_custom_call.1} parent=1 // pred_region
      _
    $region13: #{tpu_custom_call.1} parent=1 // pred_fallthru
      _
    // Predicated region
    $region14: #{tpu_custom_call.1} parent=1 // pred_check
      _
    $region15: #{tpu_custom_call.1} parent=1 // pred_check_branch
      %36 = sbr.rel (0) target = $region17
    $region16: #{tpu_custom_call.1} parent=1 // pred_region
      _
    $region17: #{tpu_custom_call.1} parent=1 // pred_fallthru
      _
    // Predicated region
    $region18: #{tpu_custom_call.1} parent=1 // pred_check
      _
    $region19: #{tpu_custom_call.1} parent=1 // pred_check_branch
      %38 = sbr.rel (0) target = $region21
    $region20: #{tpu_custom_call.1} parent=1 // pred_region
      _
    $region21: #{tpu_custom_call.1} parent=1 // pred_fallthru
      _
    // Predicated region
    $region22: #{tpu_custom_call.1} parent=1 // pred_check
      _
    $region23: #{tpu_custom_call.1} parent=1 // pred_check_branch
      %40 = sbr.rel (0) target = $region25
    $region24: #{tpu_custom_call.1} parent=1 // pred_region
      _
    $region25: #{tpu_custom_call.1} parent=1 // pred_fallthru
      _
    // Predicated region
    $region26: #{tpu_custom_call.1} parent=1 // pred_check
      _
    $region27: #{tpu_custom_call.1} parent=1 // pred_check_branch
      %42 = sbr.rel (0) target = $region29
    $region28: #{tpu_custom_call.1} parent=1 // pred_region
      _
    $region29: #{tpu_custom_call.1} parent=1 // pred_fallthru
      _
    // Predicated region
    $region30: #{tpu_custom_call.1} parent=1 // pred_check
      _
    $region31: #{tpu_custom_call.1} parent=1 // pred_check_branch
      %44 = sbr.rel (0) target = $region33
    $region32: #{tpu_custom_call.1} parent=1 // pred_region
      _
    $region33: #{tpu_custom_call.1} parent=1 // pred_fallthru
      _
    // Predicated region
    $region34: #{tpu_custom_call.1} parent=1 // pred_check
      _
    $region35: #{tpu_custom_call.1} parent=1 // pred_check_branch
      %46 = sbr.rel (0) target = $region37
    $region36: #{tpu_custom_call.1} parent=1 // pred_region
      _
    $region37: #{tpu_custom_call.1} parent=1 // pred_fallthru
      _
    // Predicated region
    $region38: #{tpu_custom_call.1} parent=1 // pred_check
      _
    $region39: #{tpu_custom_call.1} parent=1 // pred_check_branch
      %48 = sbr.rel (0) target = $region41
    $region40: #{tpu_custom_call.1} parent=1 // pred_region
      _
    $region41: #{tpu_custom_call.1} parent=1 // pred_fallthru
      _
    // Predicated region
    $region42: #{tpu_custom_call.1} parent=1 // pred_check
      _
    $region43: #{tpu_custom_call.1} parent=1 // pred_check_branch
      %50 = sbr.rel (0) target = $region45
    $region44: #{tpu_custom_call.1} parent=1 // pred_region
      %51 = dma.done [#allocation4], 256
    $region45: #{tpu_custom_call.1} parent=1 // pred_fallthru
      _
    %v53 = vld [vmem:[%s0] sm:$0xf]
    %v54 = vld [vmem:[%s0 + $0x4] sm:$0xf]
    %v55 = vld [vmem:[%s0 + $0x8] sm:$0xf]
    %v56 = vld [vmem:[%s0 + $0xc] sm:$0xf]
    %v57 = vld [vmem:[%s2] sm:$0xf]
    %v58 = vld [vmem:[%s3] sm:$0x1]
    %v60 = vlaneseq
    %v61 = vshrl.u32 %v60, 7
    %v62 = vsub.s32 0, %v61
    %v63 = vrot.slane %v58, %v62
    %v69 = vunpack.c.l.b16 %v53
    %v70 = vunpack.c.l.b16 %v54
    %v71 = vunpack.c.l.b16 %v55
    %v72 = vunpack.c.l.b16 %v56
    %v73 = vpack.c.b16 %v70, %v69
    %v74 = vpack.c.b16 %v72, %v71
    %vm75 = vcmask 64512
    %v77 = vsel %vm75, %v73, 0
    %v80 = vsel %vm75, %v74, 0
    %vm82 = vcmask 1043456
    %v84 = vsel %vm82, %v57, 0
    %86 = vmatprep.subr.bf16.mxu0 0
    %87 = vmatpush1.bf16.msra.mxu0 %v84
    %88 = vmatprep.subr.bf16.mxu0 0
    %89 = vmatpush1.bf16.msra.mxu0 0
    %90 = vmatprep.subr.bf16.mxu0 0
    %91 = vmatpush1.bf16.msra.mxu0 0
    %92 = vmatprep.subr.bf16.mxu0 0
    %93 = vmatpush1.bf16.msra.mxu0 0
    %94 = vmatprep.subr.bf16.mxu0 0
    %95 = vmatpush1.bf16.msra.mxu0 0
    %96 = vmatprep.subr.bf16.mxu0 0
    %97 = vmatpush1.bf16.msra.mxu0 0
    %98 = vmatprep.subr.bf16.mxu0 0
    %99 = vmatpush1.bf16.msra.mxu0 0
    %100 = vmatprep.subr.bf16.mxu0 0
    %101 = vmatpush1.bf16.msra.mxu0 0
    %102 = vmatprep.subr.bf16.mxu0 0
    %103 = vmatpush1.bf16.msra.mxu0 0
    %104 = vmatprep.subr.bf16.mxu0 0
    %105 = vmatpush1.bf16.msra.mxu0 0
    %106 = vmatprep.subr.bf16.mxu0 0
    %107 = vmatpush1.bf16.msra.mxu0 0
    %108 = vmatprep.subr.bf16.mxu0 0
    %109 = vmatpush1.bf16.msra.mxu0 0
    %110 = vmatprep.subr.bf16.mxu0 0
    %111 = vmatpush1.bf16.msra.mxu0 0
    %112 = vmatprep.subr.bf16.mxu0 0
    %113 = vmatpush1.bf16.msra.mxu0 0
    %114 = vmatprep.subr.bf16.mxu0 0
    %115 = vmatpush1.bf16.msra.mxu0 0
    %116 = vmatprep.subr.bf16.mxu0 0
    %117 = vmatpush1.bf16.msra.mxu0 0
    %118 = vmatprep.mubr.bf16.mxu0 0
    %119 = vmatmul.mubr.bf16.gmra.mrb[0].mxu0 %v77
    %v120 = vpop.f32.mrb[0].mxu0
    %v121 = vadd.f32 %v63, %v120
    %v122 = vpop.f32.mrb[0].mxu0
    %v123 = vpop.f32.mrb[0].mxu0
    %v124 = vadd.f32 %v63, %v123
    %v125 = vpop.f32.mrb[0].mxu0
    %126 = vmatprep.mubr.bf16.mxu0 0
    %127 = vmatmul.mubr.bf16.gmra.mrb[0].mxu0 %v80
    %v128 = vpop.f32.mrb[0].mxu0
    %v129 = vadd.f32 %v63, %v128
    %v130 = vpop.f32.mrb[0].mxu0
    %v131 = vpop.f32.mrb[0].mxu0
    %v132 = vadd.f32 %v63, %v131
    %v133 = vpop.f32.mrb[0].mxu0
    %134 = vdwg.mxu0
    %v135 = vld [vmem:[#allocation3] sm:$0xf]
    %v136 = vld [vmem:[#allocation3 + $0x4] sm:$0xf]
    %v137 = vld [vmem:[#allocation3 + $0x8] sm:$0xf]
    %v138 = vld [vmem:[#allocation3 + $0xc] sm:$0xf]
    %vm139 = vcmask 261120
    %v140 = vsel %vm139, %v121, 0.0
    %141 = vadd.xlane.f32.xlu0 %v140
    %v142 = vpop.xlane.xlu0 %141
    %v143 = vsel %vm139, %v124, 0.0
    %144 = vadd.xlane.f32.xlu0 %v143
    %v145 = vpop.xlane.xlu0 %144
    %v146 = vsel %vm139, %v129, 0.0
    %147 = vadd.xlane.f32.xlu0 %v146
    %v148 = vpop.xlane.xlu0 %147
    %v149 = vsel %vm139, %v132, 0.0
    %150 = vadd.xlane.f32.xlu0 %v149
    %v151 = vpop.xlane.xlu0 %150
    %v152 = vmul.f32 %v121, %v121
    %v153 = vmul.f32 %v124, %v124
    %v154 = vmul.f32 %v129, %v129
    %v155 = vmul.f32 %v132, %v132
    %v156 = vsel %vm139, %v152, 0.0
    %157 = vadd.xlane.f32.xlu0 %v156
    %v158 = vpop.xlane.xlu0 %157
    %v159 = vsel %vm139, %v153, 0.0
    %160 = vadd.xlane.f32.xlu0 %v159
    %v161 = vpop.xlane.xlu0 %160
    %v162 = vsel %vm139, %v154, 0.0
    %163 = vadd.xlane.f32.xlu0 %v162
    %v164 = vpop.xlane.xlu0 %163
    %v165 = vsel %vm139, %v155, 0.0
    %166 = vadd.xlane.f32.xlu0 %v165
    %v167 = vpop.xlane.xlu0 %166
    %v168 = vmul.f32 %v142, 0.03125
    %v169 = vmul.f32 %v145, 0.03125
    %v170 = vmul.f32 %v148, 0.03125
    %v171 = vmul.f32 %v151, 0.03125
    %v172 = vmul.f32 %v158, 0.03125
    %v173 = vmul.f32 %v161, 0.03125
    %v174 = vmul.f32 %v164, 0.03125
    %v175 = vmul.f32 %v167, 0.03125
    %v176 = vmul.f32 %v168, %v168
    %v177 = vmul.f32 %v169, %v169
    %v178 = vmul.f32 %v170, %v170
    %v179 = vmul.f32 %v171, %v171
    %v180 = vsub.f32 %v172, %v176
    %v181 = vsub.f32 %v173, %v177
    %v182 = vsub.f32 %v174, %v178
    %v183 = vsub.f32 %v175, %v179
    %v184 = vmax.f32 %v180, 0.0
    %v185 = vmax.f32 %v181, 0.0
    %v186 = vmax.f32 %v182, 0.0
    %v187 = vmax.f32 %v183, 0.0
    %v188 = vsub.f32 %v121, %v168
    %v189 = vsub.f32 %v124, %v169
    %v190 = vsub.f32 %v129, %v170
    %v191 = vsub.f32 %v132, %v171
    %v192 = vadd.f32 %v184, 1e-05
    %v193 = vadd.f32 %v185, 1e-05
    %v194 = vadd.f32 %v186, 1e-05
    %v195 = vadd.f32 %v187, 1e-05
    %v196 = vrsqrt.pop %v192
    %v197 = vrsqrt.pop %v193
    %v198 = vrsqrt.pop %v194
    %v199 = vrsqrt.pop %v195
    %v200 = vmul.f32 %v188, %v196
    %v201 = vmul.f32 %v189, %v197
    %v202 = vmul.f32 %v190, %v198
    %v203 = vmul.f32 %v191, %v199
    %v204 = vld [vmem:[%s4] sm:$0x1]
    %v206 = vlaneseq
    %v207 = vshrl.u32 %v206, 7
    %v208 = vsub.s32 0, %v207
    %v209 = vrot.slane %v204, %v208
    %v211 = vmul.f32 %v200, %v209
    %v212 = vmul.f32 %v201, %v209
    %v213 = vmul.f32 %v202, %v209
    %v214 = vmul.f32 %v203, %v209
    %v215 = vld [vmem:[%s5] sm:$0x1]
    %v217 = vlaneseq
    %v218 = vshrl.u32 %v217, 7
    %v219 = vsub.s32 0, %v218
    %v220 = vrot.slane %v215, %v219
    %v222 = vadd.f32 %v211, %v220
    %v223 = vadd.f32 %v212, %v220
    %v224 = vadd.f32 %v213, %v220
    %v225 = vadd.f32 %v214, %v220
    %v226 = vmax.f32 %v222, 0.0
    %v227 = vmax.f32 %v223, 0.0
    %v228 = vmax.f32 %v224, 0.0
    %v229 = vmax.f32 %v225, 0.0
    %v230 = vpack.c.bf16 %v227, %v226
    %v231 = vpack.c.bf16 %v229, %v228
    %v232 = vld [vmem:[%s6] sm:$0xf]
    %v233 = vld [vmem:[%s6 + $0x4] sm:$0xf]
    %v234 = vld [vmem:[%s6 + $0x8] sm:$0xf]
    %v235 = vld [vmem:[%s6 + $0xc] sm:$0xf]
    %v240 = vunpack.c.l.b16 %v232
    %v241 = vunpack.c.l.b16 %v233
    %v242 = vunpack.c.l.b16 %v234
    %v243 = vunpack.c.l.b16 %v235
    %v244 = vpack.c.b16 %v241, %v240
    %v245 = vpack.c.b16 %v243, %v242
    %v249 = vsel %vm139, %v230, 0
    %v252 = vsel %vm139, %v231, 0
    %254 = vmatprep.subr.bf16.mxu0 0
    %255 = vmatpush1.bf16.msra.mxu0 %v244
    %256 = vmatprep.subr.bf16.mxu0 0
    %257 = vmatpush1.bf16.msra.mxu0 %v245
    %258 = vmatprep.subr.bf16.mxu0 0
    %259 = vmatpush1.bf16.msra.mxu0 0
    %260 = vmatprep.subr.bf16.mxu0 0
    %261 = vmatpush1.bf16.msra.mxu0 0
    %262 = vmatprep.subr.bf16.mxu0 0
    %263 = vmatpush1.bf16.msra.mxu0 0
    %264 = vmatprep.subr.bf16.mxu0 0
    %265 = vmatpush1.bf16.msra.mxu0 0
    %266 = vmatprep.subr.bf16.mxu0 0
    %267 = vmatpush1.bf16.msra.mxu0 0
    %268 = vmatprep.subr.bf16.mxu0 0
    %269 = vmatpush1.bf16.msra.mxu0 0
    %270 = vmatprep.subr.bf16.mxu0 0
    %271 = vmatpush1.bf16.msra.mxu0 0
    %272 = vmatprep.subr.bf16.mxu0 0
    %273 = vmatpush1.bf16.msra.mxu0 0
    %274 = vmatprep.subr.bf16.mxu0 0
    %275 = vmatpush1.bf16.msra.mxu0 0
    %276 = vmatprep.subr.bf16.mxu0 0
    %277 = vmatpush1.bf16.msra.mxu0 0
    %278 = vmatprep.subr.bf16.mxu0 0
    %279 = vmatpush1.bf16.msra.mxu0 0
    %280 = vmatprep.subr.bf16.mxu0 0
    %281 = vmatpush1.bf16.msra.mxu0 0
    %282 = vmatprep.subr.bf16.mxu0 0
    %283 = vmatpush1.bf16.msra.mxu0 0
    %284 = vmatprep.subr.bf16.mxu0 0
    %285 = vmatpush1.bf16.msra.mxu0 0
    %286 = vmatprep.mubr.bf16.mxu0 0
    %287 = vmatmul.mubr.bf16.gmra.mrb[0].mxu0 %v249
    %v288 = vpop.f32.mrb[0].mxu0
    %v289 = vadd.f32 0.0, %v288
    %v290 = vpop.f32.mrb[0].mxu0
    %v291 = vpop.f32.mrb[0].mxu0
    %v292 = vadd.f32 0.0, %v291
    %v293 = vpop.f32.mrb[0].mxu0
    %294 = vmatprep.mubr.bf16.mxu0 0
    %295 = vmatmul.mubr.bf16.gmra.mrb[0].mxu0 %v252
    %v296 = vpop.f32.mrb[0].mxu0
    %v297 = vadd.f32 0.0, %v296
    %v298 = vpop.f32.mrb[0].mxu0
    %v299 = vpop.f32.mrb[0].mxu0
    %v300 = vadd.f32 0.0, %v299
    %v301 = vpop.f32.mrb[0].mxu0
    %302 = vdwg.mxu0
    %v303 = vpack.c.bf16 %v292, %v289
    %v304 = vpack.c.bf16 %v300, %v297
    %v307 = vunpack.c.l.b16 %v135
    %v308 = vunpack.c.l.b16 %v136
    %v309 = vpack.c.b16 %v308, %v307
    %vm310 = vcmask 130048
    %v312 = vsel %vm310, %v309, 0
    %314 = vmatprep.subr.bf16.mxu0 0
    %315 = vmatpush1.bf16.msra.mxu0 %v303
    %316 = vmatprep.subr.bf16.mxu0 0
    %317 = vmatpush1.bf16.msra.mxu0 0
    %318 = vmatprep.subr.bf16.mxu0 0
    %319 = vmatpush1.bf16.msra.mxu0 0
    %320 = vmatprep.subr.bf16.mxu0 0
    %321 = vmatpush1.bf16.msra.mxu0 0
    %322 = vmatprep.subr.bf16.mxu0 0
    %323 = vmatpush1.bf16.msra.mxu0 0
    %324 = vmatprep.subr.bf16.mxu0 0
    %325 = vmatpush1.bf16.msra.mxu0 0
    %326 = vmatprep.subr.bf16.mxu0 0
    %327 = vmatpush1.bf16.msra.mxu0 0
    %328 = vmatprep.subr.bf16.mxu0 0
    %329 = vmatpush1.bf16.msra.mxu0 0
    %330 = vmatprep.subr.bf16.mxu0 0
    %331 = vmatpush1.bf16.msra.mxu0 0
    %332 = vmatprep.subr.bf16.mxu0 0
    %333 = vmatpush1.bf16.msra.mxu0 0
    %334 = vmatprep.subr.bf16.mxu0 0
    %335 = vmatpush1.bf16.msra.mxu0 0
    %336 = vmatprep.subr.bf16.mxu0 0
    %337 = vmatpush1.bf16.msra.mxu0 0
    %338 = vmatprep.subr.bf16.mxu0 0
    %339 = vmatpush1.bf16.msra.mxu0 0
    %340 = vmatprep.subr.bf16.mxu0 0
    %341 = vmatpush1.bf16.msra.mxu0 0
    %342 = vmatprep.subr.bf16.mxu0 0
    %343 = vmatpush1.bf16.msra.mxu0 0
    %344 = vmatprep.subr.bf16.mxu0 0
    %345 = vmatpush1.bf16.msra.mxu0 0
    %346 = vmatprep.mubr.bf16.mxu0 0
    %347 = vmatmul.mubr.bf16.gmra.mrb[0].mxu0 %v312
    %v348 = vpop.f32.mrb[0].mxu0
    %v349 = vadd.f32 0.0, %v348
    %v350 = vpop.f32.mrb[0].mxu0
    %v351 = vpop.f32.mrb[0].mxu0
    %v352 = vadd.f32 0.0, %v351
    %v353 = vpop.f32.mrb[0].mxu0
    %354 = vdwg.mxu0
    %v357 = vunpack.c.l.b16 %v137
    %v358 = vunpack.c.l.b16 %v138
    %v359 = vpack.c.b16 %v358, %v357
    %v361 = vsel %vm310, %v359, 0
    %363 = vmatprep.subr.bf16.mxu0 0
    %364 = vmatpush1.bf16.msra.mxu0 %v304
    %365 = vmatprep.subr.bf16.mxu0 0
    %366 = vmatpush1.bf16.msra.mxu0 0
    %367 = vmatprep.subr.bf16.mxu0 0
    %368 = vmatpush1.bf16.msra.mxu0 0
    %369 = vmatprep.subr.bf16.mxu0 0
    %370 = vmatpush1.bf16.msra.mxu0 0
    %371 = vmatprep.subr.bf16.mxu0 0
    %372 = vmatpush1.bf16.msra.mxu0 0
    %373 = vmatprep.subr.bf16.mxu0 0
    %374 = vmatpush1.bf16.msra.mxu0 0
    %375 = vmatprep.subr.bf16.mxu0 0
    %376 = vmatpush1.bf16.msra.mxu0 0
    %377 = vmatprep.subr.bf16.mxu0 0
    %378 = vmatpush1.bf16.msra.mxu0 0
    %379 = vmatprep.subr.bf16.mxu0 0
    %380 = vmatpush1.bf16.msra.mxu0 0
    %381 = vmatprep.subr.bf16.mxu0 0
    %382 = vmatpush1.bf16.msra.mxu0 0
    %383 = vmatprep.subr.bf16.mxu0 0
    %384 = vmatpush1.bf16.msra.mxu0 0
    %385 = vmatprep.subr.bf16.mxu0 0
    %386 = vmatpush1.bf16.msra.mxu0 0
    %387 = vmatprep.subr.bf16.mxu0 0
    %388 = vmatpush1.bf16.msra.mxu0 0
    %389 = vmatprep.subr.bf16.mxu0 0
    %390 = vmatpush1.bf16.msra.mxu0 0
    %391 = vmatprep.subr.bf16.mxu0 0
    %392 = vmatpush1.bf16.msra.mxu0 0
    %393 = vmatprep.subr.bf16.mxu0 0
    %394 = vmatpush1.bf16.msra.mxu0 0
    %395 = vmatprep.mubr.bf16.mxu0 0
    %396 = vmatmul.mubr.bf16.gmra.mrb[0].mxu0 %v361
    %v397 = vpop.f32.mrb[0].mxu0
    %v398 = vadd.f32 0.0, %v397
    %v399 = vpop.f32.mrb[0].mxu0
    %v400 = vpop.f32.mrb[0].mxu0
    %v401 = vadd.f32 0.0, %v400
    %v402 = vpop.f32.mrb[0].mxu0
    %403 = vdwg.mxu0
    %v404 = vadd.f32 %v121, %v349
    %v405 = vadd.f32 %v124, %v352
    %v406 = vadd.f32 %v129, %v398
    %v407 = vadd.f32 %v132, %v401
    %v408 = vld [vmem:[%s7] sm:$0x1]
    %v410 = vlaneseq
    %v411 = vshrl.u32 %v410, 7
    %v412 = vsub.s32 0, %v411
    %v413 = vrot.slane %v408, %v412
    %v415 = vadd.f32 %v404, %v413
    %v416 = vadd.f32 %v405, %v413
    %v417 = vadd.f32 %v406, %v413
    %v418 = vadd.f32 %v407, %v413
    %v419 = vsel %vm139, %v415, 0.0
    %420 = vadd.xlane.f32.xlu0 %v419
    %v421 = vpop.xlane.xlu0 %420
    %v422 = vsel %vm139, %v416, 0.0
    %423 = vadd.xlane.f32.xlu0 %v422
    %v424 = vpop.xlane.xlu0 %423
    %v425 = vsel %vm139, %v417, 0.0
    %426 = vadd.xlane.f32.xlu0 %v425
    %v427 = vpop.xlane.xlu0 %426
    %v428 = vsel %vm139, %v418, 0.0
    %429 = vadd.xlane.f32.xlu0 %v428
    %v430 = vpop.xlane.xlu0 %429
    %v431 = vmul.f32 %v415, %v415
    %v432 = vmul.f32 %v416, %v416
    %v433 = vmul.f32 %v417, %v417
    %v434 = vmul.f32 %v418, %v418
    %v435 = vsel %vm139, %v431, 0.0
    %436 = vadd.xlane.f32.xlu0 %v435
    %v437 = vpop.xlane.xlu0 %436
    %v438 = vsel %vm139, %v432, 0.0
    %439 = vadd.xlane.f32.xlu0 %v438
    %v440 = vpop.xlane.xlu0 %439
    %v441 = vsel %vm139, %v433, 0.0
    %442 = vadd.xlane.f32.xlu0 %v441
    %v443 = vpop.xlane.xlu0 %442
    %v444 = vsel %vm139, %v434, 0.0
    %445 = vadd.xlane.f32.xlu0 %v444
    %v446 = vpop.xlane.xlu0 %445
    %v447 = vmul.f32 %v421, 0.03125
    %v448 = vmul.f32 %v424, 0.03125
    %v449 = vmul.f32 %v427, 0.03125
    %v450 = vmul.f32 %v430, 0.03125
    %v451 = vmul.f32 %v437, 0.03125
    %v452 = vmul.f32 %v440, 0.03125
    %v453 = vmul.f32 %v443, 0.03125
    %v454 = vmul.f32 %v446, 0.03125
    %v455 = vmul.f32 %v447, %v447
    %v456 = vmul.f32 %v448, %v448
    %v457 = vmul.f32 %v449, %v449
    %v458 = vmul.f32 %v450, %v450
    %v459 = vsub.f32 %v451, %v455
    %v460 = vsub.f32 %v452, %v456
    %v461 = vsub.f32 %v453, %v457
    %v462 = vsub.f32 %v454, %v458
    %v463 = vmax.f32 %v459, 0.0
    %v464 = vmax.f32 %v460, 0.0
    %v465 = vmax.f32 %v461, 0.0
    %v466 = vmax.f32 %v462, 0.0
    %v467 = vsub.f32 %v415, %v447
    %v468 = vsub.f32 %v416, %v448
    %v469 = vsub.f32 %v417, %v449
    %v470 = vsub.f32 %v418, %v450
    %v471 = vadd.f32 %v463, 1e-05
    %v472 = vadd.f32 %v464, 1e-05
    %v473 = vadd.f32 %v465, 1e-05
    %v474 = vadd.f32 %v466, 1e-05
    %v475 = vrsqrt.pop %v471
    %v476 = vrsqrt.pop %v472
    %v477 = vrsqrt.pop %v473
    %v478 = vrsqrt.pop %v474
    %v479 = vmul.f32 %v467, %v475
    %v480 = vmul.f32 %v468, %v476
    %v481 = vmul.f32 %v469, %v477
    %v482 = vmul.f32 %v470, %v478
    %s483 = scalar_lea.vmem %s4, 1
    %v484 = vld [vmem:[%s483] sm:$0x1]
    %v486 = vlaneseq
    %v487 = vshrl.u32 %v486, 7
    %v488 = vsub.s32 0, %v487
    %v489 = vrot.slane %v484, %v488
    %v491 = vmul.f32 %v479, %v489
    %v492 = vmul.f32 %v480, %v489
    %v493 = vmul.f32 %v481, %v489
    %v494 = vmul.f32 %v482, %v489
    %s495 = scalar_lea.vmem %s5, 1
    %v496 = vld [vmem:[%s495] sm:$0x1]
    %v498 = vlaneseq
    %v499 = vshrl.u32 %v498, 7
    %v500 = vsub.s32 0, %v499
    %v501 = vrot.slane %v496, %v500
    %v503 = vadd.f32 %v491, %v501
    %v504 = vadd.f32 %v492, %v501
    %v505 = vadd.f32 %v493, %v501
    %v506 = vadd.f32 %v494, %v501
    %v507 = vmax.f32 %v503, 0.0
    %v508 = vmax.f32 %v504, 0.0
    %v509 = vmax.f32 %v505, 0.0
    %v510 = vmax.f32 %v506, 0.0
    %v511 = vpack.c.bf16 %v508, %v507
    %v512 = vpack.c.bf16 %v510, %v509
    %s513 = scalar_lea.vmem %s6, 16
    %v514 = vld [vmem:[%s513] sm:$0xf]
    %v515 = vld [vmem:[%s513 + $0x4] sm:$0xf]
    %v516 = vld [vmem:[%s513 + $0x8] sm:$0xf]
    %v517 = vld [vmem:[%s513 + $0xc] sm:$0xf]
    %v522 = vunpack.c.l.b16 %v514
    %v523 = vunpack.c.l.b16 %v515
    %v524 = vunpack.c.l.b16 %v516
    %v525 = vunpack.c.l.b16 %v517
    %v526 = vpack.c.b16 %v523, %v522
    %v527 = vpack.c.b16 %v525, %v524
    %v531 = vsel %vm139, %v511, 0
    %v534 = vsel %vm139, %v512, 0
    %536 = vmatprep.subr.bf16.mxu0 0
    %537 = vmatpush1.bf16.msra.mxu0 %v526
    %538 = vmatprep.subr.bf16.mxu0 0
    %539 = vmatpush1.bf16.msra.mxu0 %v527
    %540 = vmatprep.subr.bf16.mxu0 0
    %541 = vmatpush1.bf16.msra.mxu0 0
    %542 = vmatprep.subr.bf16.mxu0 0
    %543 = vmatpush1.bf16.msra.mxu0 0
    %544 = vmatprep.subr.bf16.mxu0 0
    %545 = vmatpush1.bf16.msra.mxu0 0
    %546 = vmatprep.subr.bf16.mxu0 0
    %547 = vmatpush1.bf16.msra.mxu0 0
    %548 = vmatprep.subr.bf16.mxu0 0
    %549 = vmatpush1.bf16.msra.mxu0 0
    %550 = vmatprep.subr.bf16.mxu0 0
    %551 = vmatpush1.bf16.msra.mxu0 0
    %552 = vmatprep.subr.bf16.mxu0 0
    %553 = vmatpush1.bf16.msra.mxu0 0
    %554 = vmatprep.subr.bf16.mxu0 0
    %555 = vmatpush1.bf16.msra.mxu0 0
    %556 = vmatprep.subr.bf16.mxu0 0
    %557 = vmatpush1.bf16.msra.mxu0 0
    %558 = vmatprep.subr.bf16.mxu0 0
    %559 = vmatpush1.bf16.msra.mxu0 0
    %560 = vmatprep.subr.bf16.mxu0 0
    %561 = vmatpush1.bf16.msra.mxu0 0
    %562 = vmatprep.subr.bf16.mxu0 0
    %563 = vmatpush1.bf16.msra.mxu0 0
    %564 = vmatprep.subr.bf16.mxu0 0
    %565 = vmatpush1.bf16.msra.mxu0 0
    %566 = vmatprep.subr.bf16.mxu0 0
    %567 = vmatpush1.bf16.msra.mxu0 0
    %568 = vmatprep.mubr.bf16.mxu0 0
    %569 = vmatmul.mubr.bf16.gmra.mrb[0].mxu0 %v531
    %v570 = vpop.f32.mrb[0].mxu0
    %v571 = vadd.f32 0.0, %v570
    %v572 = vpop.f32.mrb[0].mxu0
    %v573 = vpop.f32.mrb[0].mxu0
    %v574 = vadd.f32 0.0, %v573
    %v575 = vpop.f32.mrb[0].mxu0
    %576 = vmatprep.mubr.bf16.mxu0 0
    %577 = vmatmul.mubr.bf16.gmra.mrb[0].mxu0 %v534
    %v578 = vpop.f32.mrb[0].mxu0
    %v579 = vadd.f32 0.0, %v578
    %v580 = vpop.f32.mrb[0].mxu0
    %v581 = vpop.f32.mrb[0].mxu0
    %v582 = vadd.f32 0.0, %v581
    %v583 = vpop.f32.mrb[0].mxu0
    %584 = vdwg.mxu0
    %v585 = vpack.c.bf16 %v574, %v571
    %v586 = vpack.c.bf16 %v582, %v579
    %587 = vmatprep.subr.bf16.mxu0 0
    %588 = vmatpush1.bf16.msra.mxu0 %v585
    %589 = vmatprep.subr.bf16.mxu0 0
    %590 = vmatpush1.bf16.msra.mxu0 0
    %591 = vmatprep.subr.bf16.mxu0 0
    %592 = vmatpush1.bf16.msra.mxu0 0
    %593 = vmatprep.subr.bf16.mxu0 0
    %594 = vmatpush1.bf16.msra.mxu0 0
    %595 = vmatprep.subr.bf16.mxu0 0
    %596 = vmatpush1.bf16.msra.mxu0 0
    %597 = vmatprep.subr.bf16.mxu0 0
    %598 = vmatpush1.bf16.msra.mxu0 0
    %599 = vmatprep.subr.bf16.mxu0 0
    %600 = vmatpush1.bf16.msra.mxu0 0
    %601 = vmatprep.subr.bf16.mxu0 0
    %602 = vmatpush1.bf16.msra.mxu0 0
    %603 = vmatprep.subr.bf16.mxu0 0
    %604 = vmatpush1.bf16.msra.mxu0 0
    %605 = vmatprep.subr.bf16.mxu0 0
    %606 = vmatpush1.bf16.msra.mxu0 0
    %607 = vmatprep.subr.bf16.mxu0 0
    %608 = vmatpush1.bf16.msra.mxu0 0
    %609 = vmatprep.subr.bf16.mxu0 0
    %610 = vmatpush1.bf16.msra.mxu0 0
    %611 = vmatprep.subr.bf16.mxu0 0
    %612 = vmatpush1.bf16.msra.mxu0 0
    %613 = vmatprep.subr.bf16.mxu0 0
    %614 = vmatpush1.bf16.msra.mxu0 0
    %615 = vmatprep.subr.bf16.mxu0 0
    %616 = vmatpush1.bf16.msra.mxu0 0
    %617 = vmatprep.subr.bf16.mxu0 0
    %618 = vmatpush1.bf16.msra.mxu0 0
    %619 = vmatprep.mubr.bf16.mxu0 0
    %620 = vmatmul.mubr.bf16.gmra.mrb[0].mxu0 %v312
    %v621 = vpop.f32.mrb[0].mxu0
    %v622 = vadd.f32 0.0, %v621
    %v623 = vpop.f32.mrb[0].mxu0
    %v624 = vpop.f32.mrb[0].mxu0
    %v625 = vadd.f32 0.0, %v624
    %v626 = vpop.f32.mrb[0].mxu0
    %627 = vdwg.mxu0
    %628 = vmatprep.subr.bf16.mxu0 0
    %629 = vmatpush1.bf16.msra.mxu0 %v586
    %630 = vmatprep.subr.bf16.mxu0 0
    %631 = vmatpush1.bf16.msra.mxu0 0
    %632 = vmatprep.subr.bf16.mxu0 0
    %633 = vmatpush1.bf16.msra.mxu0 0
    %634 = vmatprep.subr.bf16.mxu0 0
    %635 = vmatpush1.bf16.msra.mxu0 0
    %636 = vmatprep.subr.bf16.mxu0 0
    %637 = vmatpush1.bf16.msra.mxu0 0
    %638 = vmatprep.subr.bf16.mxu0 0
    %639 = vmatpush1.bf16.msra.mxu0 0
    %640 = vmatprep.subr.bf16.mxu0 0
    %641 = vmatpush1.bf16.msra.mxu0 0
    %642 = vmatprep.subr.bf16.mxu0 0
    %643 = vmatpush1.bf16.msra.mxu0 0
    %644 = vmatprep.subr.bf16.mxu0 0
    %645 = vmatpush1.bf16.msra.mxu0 0
    %646 = vmatprep.subr.bf16.mxu0 0
    %647 = vmatpush1.bf16.msra.mxu0 0
    %648 = vmatprep.subr.bf16.mxu0 0
    %649 = vmatpush1.bf16.msra.mxu0 0
    %650 = vmatprep.subr.bf16.mxu0 0
    %651 = vmatpush1.bf16.msra.mxu0 0
    %652 = vmatprep.subr.bf16.mxu0 0
    %653 = vmatpush1.bf16.msra.mxu0 0
    %654 = vmatprep.subr.bf16.mxu0 0
    %655 = vmatpush1.bf16.msra.mxu0 0
    %656 = vmatprep.subr.bf16.mxu0 0
    %657 = vmatpush1.bf16.msra.mxu0 0
    %658 = vmatprep.subr.bf16.mxu0 0
    %659 = vmatpush1.bf16.msra.mxu0 0
    %660 = vmatprep.mubr.bf16.mxu0 0
    %661 = vmatmul.mubr.bf16.gmra.mrb[0].mxu0 %v361
    %v662 = vpop.f32.mrb[0].mxu0
    %v663 = vadd.f32 0.0, %v662
    %v664 = vpop.f32.mrb[0].mxu0
    %v665 = vpop.f32.mrb[0].mxu0
    %v666 = vadd.f32 0.0, %v665
    %v667 = vpop.f32.mrb[0].mxu0
    %668 = vdwg.mxu0
    %v669 = vadd.f32 %v415, %v622
    %v670 = vadd.f32 %v416, %v625
    %v671 = vadd.f32 %v417, %v663
    %v672 = vadd.f32 %v418, %v666
    %s673 = scalar_lea.vmem %s7, 1
    %v674 = vld [vmem:[%s673] sm:$0x1]
    %v676 = vlaneseq
    %v677 = vshrl.u32 %v676, 7
    %v678 = vsub.s32 0, %v677
    %v679 = vrot.slane %v674, %v678
    %v681 = vadd.f32 %v669, %v679
    %v682 = vadd.f32 %v670, %v679
    %v683 = vadd.f32 %v671, %v679
    %v684 = vadd.f32 %v672, %v679
    %v685 = vld [vmem:[%s8] sm:$0x1]
    %v687 = vlaneseq
    %v688 = vshrl.u32 %v687, 7
    %v689 = vsub.s32 0, %v688
    %v690 = vrot.slane %v685, %v689
    %v692 = vmul.f32 %v681, %v690
    %v693 = vmul.f32 %v682, %v690
    %v694 = vmul.f32 %v683, %v690
    %v695 = vmul.f32 %v684, %v690
    %v696 = vsel %vm139, %v692, 0.0
    %697 = vadd.xlane.f32.xlu0 %v696
    %v698 = vpop.xlane.xlu0 %697
    %v699 = vsel %vm139, %v693, 0.0
    %700 = vadd.xlane.f32.xlu0 %v699
    %v701 = vpop.xlane.xlu0 %700
    %v702 = vsel %vm139, %v694, 0.0
    %703 = vadd.xlane.f32.xlu0 %v702
    %v704 = vpop.xlane.xlu0 %703
    %v705 = vsel %vm139, %v695, 0.0
    %706 = vadd.xlane.f32.xlu0 %v705
    %v707 = vpop.xlane.xlu0 %706
    %v708 = vld [vmem:[#allocation2] sm:$0x1]
    %s709 = vtos %v708
    %v710 = vstv %s709
    %v711 = vadd.f32 %v698, %v710
    %v712 = vadd.f32 %v701, %v710
    %v713 = vadd.f32 %v704, %v710
    %v714 = vadd.f32 %v707, %v710
    %v719 = vlaneseq
    %v720 = vand.u32 %v719, 127
    %v721 = vlaneseq
    %v722 = vshrl.u32 %v721, 7
    %v723 = vsub.s32 %v720, %v722
    %v724 = vrot.slane %v711, %v723
    %v725 = vadd.s32 %v720, 4294967288
    %v726 = vlaneseq
    %v727 = vshrl.u32 %v726, 7
    %v728 = vsub.s32 %v725, %v727
    %v729 = vrot.slane %v712, %v728
    %vm730 = vcmask 130112
    %v731 = vsel %vm730, %v729, %v724
    %v732 = vlaneseq
    %v733 = vshrl.u32 %v732, 7
    %v734 = vsub.s32 %v720, %v733
    %v735 = vrot.slane %v713, %v734
    %v736 = vlaneseq
    %v737 = vshrl.u32 %v736, 7
    %v738 = vsub.s32 %v725, %v737
    %v739 = vrot.slane %v714, %v738
    %v740 = vsel %vm730, %v739, %v735
    %vm741 = vcmask 1041409
    %v742 = vsel %vm741, %v740, %v731
    %vm744 = vcmask 123904
    %745 = vst.msk [vmem:[#allocation6] sm:$0x3] %vm744, %v742
    // Predicated region
    $region46: #{tpu_custom_call.1} parent=1 // pred_check
      _
    $region47: #{tpu_custom_call.1} parent=1 // pred_check_branch
      %747 = sbr.rel (0) target = $region49
    $region48: #{tpu_custom_call.1} parent=1 // pred_region
      %s749 = ssub.s32 32, 32
      %750 = vsyncadd [#allocation5], %s749
      %s752 = sshll.u32 [#allocation6], 4
      %s753 = int_to_ptr.vmem [resolvable:$true] %s752
      %755 = dma.vmem_to_hbm [thread:$0]  %s753, 32, %s10, [#allocation5]
    $region49: #{tpu_custom_call.1} parent=1 // pred_fallthru
      _
    // Predicated region
    $region50: #{tpu_custom_call.1} parent=1 // pred_check
      _
    $region51: #{tpu_custom_call.1} parent=1 // pred_check_branch
      %757 = sbr.rel (0) target = $region53
    $region52: #{tpu_custom_call.1} parent=1 // pred_region
      %758 = dma.done [#allocation5], 32
    $region53: #{tpu_custom_call.1} parent=1 // pred_fallthru
      _
    %759 = vsyncpa [#allocation4], 1
    %760 = vsyncpa [#allocation5], 1

</llo_original>
